<compile_context>
chip_gen: v5e
topology: v5e:2x2
jax: 0.10.0
libtpu: 0.0.40
codegen_flags: <defaults>
</compile_context>

<pallas_src>
import functools

import jax
import jax.numpy as jnp
from jax.experimental import pallas as pl
from jax.experimental.pallas import tpu as pltpu


def _belief_kernel(x_ref, w1_ref, b1_ref, w2_ref, b2_ref, w3_ref, b3_ref, o_ref):
    # x arrives as f32 (single HBM pass); cast to bf16 on the VPU for the MXU.
    x = x_ref[...].astype(jnp.bfloat16)

    h1 = jnp.dot(x, w1_ref[...], preferred_element_type=jnp.float32) + b1_ref[...]
    h1 = jnp.maximum(h1, 0.0)

    h2 = jnp.dot(h1.astype(jnp.bfloat16), w2_ref[...],
                 preferred_element_type=jnp.float32) + b2_ref[...]
    h2 = jnp.maximum(h2, 0.0)

    h3 = jnp.dot(h2.astype(jnp.bfloat16), w3_ref[...],
                 preferred_element_type=jnp.float32) + b3_ref[...]
    # TODO(synk): if the consumer of y is another Pallas kernel, fuse it here (and/or
    # emit bf16) instead of writing the result back to HBM at all.
    o_ref[...] = jax.nn.sigmoid(h3).astype(o_ref.dtype)


def _round_up(n, m):
    return ((n + m - 1) // m) * m


def _select_pack(in_size, h1, h2, out_size):
    # Fold `pack` batch rows into the lane dim so the output is >=128 lanes wide
    # (unmasked stores, lane-dense writeback).  Only do this while the replicated
    # block-diagonal weights stay tiny and the kernel remains memory-bound.
    if max(in_size, h1, h2, out_size) > 128:
        return 1
    p = 1
    while p < 8 and p * out_size < 128:
        p *= 2
    return p


def _block_diag(w, p):
    # Block-diagonal replication: (in, out) -> (p*in, p*out) with p copies of w.
    if p == 1:
        return w
    return jnp.kron(jnp.eye(p, dtype=w.dtype), w)


@functools.partial(jax.jit, static_argnames=("tile_b",))
def belief_forward(x, params, *, tile_b=2048):
    """x: (B, input_size) float32. params: dict of (in, out)-layout weights/biases."""
    w1, b1, w2, b2, w3, b3 = (
        params["w1"], params["b1"], params["w2"],
        params["b2"], params["w3"], params["b3"],
    )
    B, in_size = x.shape
    h1_size = w1.shape[1]
    h2_size = w2.shape[1]
    out_size = w3.shape[1]

    pack = _select_pack(in_size, h1_size, h2_size, out_size)

    # ---- batch tiling (in packed-row units; 1 packed row = `pack` batch rows) ----
    B8 = _round_up(B, pack)
    R = B8 // pack
    tr_cap = max(tile_b // pack, 8)
    num_tiles = pl.cdiv(R, tr_cap)
    if num_tiles == 1 and R >= 16:
        num_tiles = 2          # keep both v7x TensorCores busy for moderate batches
    tr = pl.cdiv(R, num_tiles)
    if num_tiles > 1:
        tr = _round_up(tr, 8)  # sublane alignment for non-full blocks
    Rp = num_tiles * tr
    Bp = Rp * pack
    if Bp != B:
        x = jnp.pad(x, ((0, Bp - B), (0, 0)))

    # Lane-dense packing of x: (Bp, in) -> (Rp, pack*in).  Contiguous, free reshape.
    x_packed = x.reshape(Rp, pack * in_size)

    # Block-diagonal bf16 weights (resident in VMEM, built once per call, ~0.9 MB)
    # and tiled f32 biases.
    w1_bd = _block_diag(w1, pack).astype(jnp.bfloat16)
    w2_bd = _block_diag(w2, pack).astype(jnp.bfloat16)
    w3_bd = _block_diag(w3, pack).astype(jnp.bfloat16)
    b1_t = jnp.tile(b1.astype(jnp.float32), (1, pack))
    b2_t = jnp.tile(b2.astype(jnp.float32), (1, pack))
    b3_t = jnp.tile(b3.astype(jnp.float32), (1, pack))

    # Weights/biases: full-array blocks, always block (0, 0) -> resident in VMEM.
    resident = lambda a: pl.BlockSpec(a.shape, lambda i: (0,) * a.ndim)

    flops = 2 * Rp * (pack * in_size * pack * h1_size
                      + pack * h1_size * pack * h2_size
                      + pack * h2_size * pack * out_size)
    bytes_accessed = (
        Bp * in_size * 4                                     # x (f32, read)
        + (w1_bd.size + w2_bd.size + w3_bd.size) * 2         # bf16 weights
        + (b1_t.size + b2_t.size + b3_t.size) * 4            # f32 biases
        + Bp * out_size * 4                                  # output (f32, write)
    )

    out = pl.pallas_call(
        _belief_kernel,
        out_shape=jax.ShapeDtypeStruct((Rp, pack * out_size), jnp.float32),
        grid=(num_tiles,),
        in_specs=[
            pl.BlockSpec((tr, pack * in_size), lambda i: (i, 0)),  # streamed batch tiles
            resident(w1_bd), resident(b1_t),
            resident(w2_bd), resident(b2_t),
            resident(w3_bd), resident(b3_t),
        ],
        out_specs=pl.BlockSpec((tr, pack * out_size), lambda i: (i, 0)),
        compiler_params=pltpu.CompilerParams(
            dimension_semantics=("parallel",),
            # Per-step working set (double-buffered x/out tiles + f32/bf16 temporaries
            # + ~1 MB resident weights) is a few MB at tile_b=2048; 32 MiB is safe
            # headroom on v5e/v6e/v7x.
            vmem_limit_bytes=32 * 1024 * 1024,
        ),
        cost_estimate=pl.CostEstimate(
            flops=flops,
            transcendentals=Bp * out_size,          # sigmoid
            bytes_accessed=bytes_accessed,
        ),
    )(x_packed, w1_bd, b1_t, w2_bd, b2_t, w3_bd, b3_t)

    # Unpack lanes back to (B, out_size): contiguous reshape + cheap slice.
    return out.reshape(Bp, out_size)[:B]


def init_belief_params(key, input_size, output_size, layers):
    """Deterministic init matching nn.Linear shapes; weights stored as (in, out)."""
    k = jax.random.split(key, 6)

    def linear(kw, kb, fan_in, fan_out):
        bound = 1.0 / jnp.sqrt(fan_in)
        w = jax.random.uniform(kw, (fan_in, fan_out), jnp.float32, -bound, bound)
        b = jax.random.uniform(kb, (1, fan_out), jnp.float32, -bound, bound)
        return w, b

    w1, b1 = linear(k[0], k[1], input_size, layers[0])
    w2, b2 = linear(k[2], k[3], layers[0], layers[1])
    w3, b3 = linear(k[4], k[5], layers[1], output_size)
    return {"w1": w1, "b1": b1, "w2": w2, "b2": b2, "w3": w3, "b3": b3}


def belief_reference(x, p):
    """Pure-JAX f32 reference."""
    h = jnp.maximum(x @ p["w1"] + p["b1"], 0.0)
    h = jnp.maximum(h @ p["w2"] + p["b2"], 0.0)
    return jax.nn.sigmoid(h @ p["w3"] + p["b3"])


if __name__ == "__main__":
    input_size, output_size, layers = 32, 16, (64, 64)

    key = jax.random.PRNGKey(0)
    kx, kp, kx2 = jax.random.split(key, 3)
    params = init_belief_params(kp, input_size, output_size, layers)

    # Small-batch check (single tile, single packed row).
    batch = 8
    x = jax.random.normal(kx, (batch, input_size), jnp.float32)
    out = jax.block_until_ready(belief_forward(x, params))
    ref = belief_reference(x, params)
    assert out.shape == (batch, output_size)
    # bf16 matmul operands => small deviation from the f32 reference.
    assert jnp.allclose(out, ref, atol=2e-2, rtol=2e-2), float(
        jnp.max(jnp.abs(out - ref)))

    # Multi-tile + padded-batch check (exercises the grid / pipelining / packing path).
    batch2 = 200
    x2 = jax.random.normal(kx2, (batch2, input_size), jnp.float32)
    out2 = jax.block_until_ready(belief_forward(x2, params, tile_b=64))
    ref2 = belief_reference(x2, params)
    assert out2.shape == (batch2, output_size)
    assert jnp.allclose(out2, ref2, atol=2e-2, rtol=2e-2), float(
        jnp.max(jnp.abs(out2 - ref2)))

    print("KERNEL_OK")
</pallas_src>

<mosaic_0001>
module attributes {stable_mosaic.version = 11 : i64} {
  func.func @_belief_kernel(%arg0: i32, %arg1: memref<1x256xf32, #tpu.memory_space<vmem>>, %arg2: memref<256x512xbf16, #tpu.memory_space<vmem>>, %arg3: memref<1x512xf32, #tpu.memory_space<vmem>>, %arg4: memref<512x512xbf16, #tpu.memory_space<vmem>>, %arg5: memref<1x512xf32, #tpu.memory_space<vmem>>, %arg6: memref<512x128xbf16, #tpu.memory_space<vmem>>, %arg7: memref<1x128xf32, #tpu.memory_space<vmem>>, %arg8: memref<1x128xf32, #tpu.memory_space<vmem>>) attributes {dimension_semantics = [#tpu.dimension_semantics<parallel>], iteration_bounds = array<i64: 1>, scalar_prefetch = 0 : i64, scratch_operands = 0 : i64, tpu.core_type = #tpu.core_type<tc>, window_params = [{transform_indices = @transform_0, window_bounds = array<i64: 1, 256>}, {pipeline_mode = #tpu.pipeline_mode<synchronous>, transform_indices = @transform_1, window_bounds = array<i64: 256, 512>}, {pipeline_mode = #tpu.pipeline_mode<synchronous>, transform_indices = @transform_2, window_bounds = array<i64: 1, 512>}, {pipeline_mode = #tpu.pipeline_mode<synchronous>, transform_indices = @transform_3, window_bounds = array<i64: 512, 512>}, {pipeline_mode = #tpu.pipeline_mode<synchronous>, transform_indices = @transform_4, window_bounds = array<i64: 1, 512>}, {pipeline_mode = #tpu.pipeline_mode<synchronous>, transform_indices = @transform_5, window_bounds = array<i64: 512, 128>}, {pipeline_mode = #tpu.pipeline_mode<synchronous>, transform_indices = @transform_6, window_bounds = array<i64: 1, 128>}, {transform_indices = @transform_7, window_bounds = array<i64: 1, 128>}]} {
    %c0 = arith.constant 0 : index
    %c0_0 = arith.constant 0 : index
    %0 = vector.load %arg1[%c0, %c0_0] : memref<1x256xf32, #tpu.memory_space<vmem>>, vector<1x256xf32>
    %1 = arith.truncf %0 : vector<1x256xf32> to vector<1x256xbf16>
    %c0_1 = arith.constant 0 : index
    %c0_2 = arith.constant 0 : index
    %2 = vector.load %arg2[%c0_1, %c0_2] : memref<256x512xbf16, #tpu.memory_space<vmem>>, vector<256x512xbf16>
    %cst = arith.constant dense<0.000000e+00> : vector<1x512xf32>
    %3 = tpu.matmul %1, %2, %cst {dimension_numbers = #tpu.dot_dimension_numbers<[1], [0], [0], [1], [0, 0, 1, 1], [], []>} : vector<1x256xbf16>, vector<256x512xbf16>, vector<1x512xf32> -> vector<1x512xf32>
    %c0_3 = arith.constant 0 : index
    %c0_4 = arith.constant 0 : index
    %4 = vector.load %arg3[%c0_3, %c0_4] : memref<1x512xf32, #tpu.memory_space<vmem>>, vector<1x512xf32>
    %5 = arith.addf %3, %4 : vector<1x512xf32>
    %cst_5 = arith.constant 0.000000e+00 : f32
    %6 = vector.broadcast %cst_5 : f32 to vector<1x512xf32>
    %7 = arith.maximumf %5, %6 : vector<1x512xf32>
    %8 = arith.truncf %7 : vector<1x512xf32> to vector<1x512xbf16>
    %c0_6 = arith.constant 0 : index
    %c0_7 = arith.constant 0 : index
    %9 = vector.load %arg4[%c0_6, %c0_7] : memref<512x512xbf16, #tpu.memory_space<vmem>>, vector<512x512xbf16>
    %cst_8 = arith.constant dense<0.000000e+00> : vector<1x512xf32>
    %10 = tpu.matmul %8, %9, %cst_8 {dimension_numbers = #tpu.dot_dimension_numbers<[1], [0], [0], [1], [0, 0, 1, 1], [], []>} : vector<1x512xbf16>, vector<512x512xbf16>, vector<1x512xf32> -> vector<1x512xf32>
    %c0_9 = arith.constant 0 : index
    %c0_10 = arith.constant 0 : index
    %11 = vector.load %arg5[%c0_9, %c0_10] : memref<1x512xf32, #tpu.memory_space<vmem>>, vector<1x512xf32>
    %12 = arith.addf %10, %11 : vector<1x512xf32>
    %cst_11 = arith.constant 0.000000e+00 : f32
    %13 = vector.broadcast %cst_11 : f32 to vector<1x512xf32>
    %14 = arith.maximumf %12, %13 : vector<1x512xf32>
    %15 = arith.truncf %14 : vector<1x512xf32> to vector<1x512xbf16>
    %c0_12 = arith.constant 0 : index
    %c0_13 = arith.constant 0 : index
    %16 = vector.load %arg6[%c0_12, %c0_13] : memref<512x128xbf16, #tpu.memory_space<vmem>>, vector<512x128xbf16>
    %cst_14 = arith.constant dense<0.000000e+00> : vector<1x128xf32>
    %17 = tpu.matmul %15, %16, %cst_14 {dimension_numbers = #tpu.dot_dimension_numbers<[1], [0], [0], [1], [0, 0, 1, 1], [], []>} : vector<1x512xbf16>, vector<512x128xbf16>, vector<1x128xf32> -> vector<1x128xf32>
    %c0_15 = arith.constant 0 : index
    %c0_16 = arith.constant 0 : index
    %18 = vector.load %arg7[%c0_15, %c0_16] : memref<1x128xf32, #tpu.memory_space<vmem>>, vector<1x128xf32>
    %19 = arith.addf %17, %18 : vector<1x128xf32>
    %20 = arith.negf %19 : vector<1x128xf32>
    %21 = math.exp %20 : vector<1x128xf32>
    %cst_17 = arith.constant 1.000000e+00 : f32
    %22 = vector.broadcast %cst_17 : f32 to vector<1x128xf32>
    %23 = arith.addf %22, %21 : vector<1x128xf32>
    %24 = arith.divf %22, %23 : vector<1x128xf32>
    %c0_18 = arith.constant 0 : index
    %c0_19 = arith.constant 0 : index
    %25 = vector.load %arg8[%c0_18, %c0_19] : memref<1x128xf32, #tpu.memory_space<vmem>>, vector<1x128xf32>
    tpu.vector_store %arg8[%c0_18, %c0_19], %24 {strides = array<i32>} : memref<1x128xf32, #tpu.memory_space<vmem>>, vector<1x128xf32>,
    return
  }
  func.func @transform_0(%arg0: i32) -> (i32, i32) {
    %c0_i32 = arith.constant 0 : i32
    %c0_i32_0 = arith.constant 0 : i32
    return %arg0, %c0_i32 : i32, i32
  }
  func.func @transform_1(%arg0: i32) -> (i32, i32) {
    %c0_i32 = arith.constant 0 : i32
    %c0_i32_0 = arith.constant 0 : i32
    %c0_i32_1 = arith.constant 0 : i32
    return %c0_i32, %c0_i32_0 : i32, i32
  }
  func.func @transform_2(%arg0: i32) -> (i32, i32) {
    %c0_i32 = arith.constant 0 : i32
    %c0_i32_0 = arith.constant 0 : i32
    %c0_i32_1 = arith.constant 0 : i32
    return %c0_i32, %c0_i32_0 : i32, i32
  }
  func.func @transform_3(%arg0: i32) -> (i32, i32) {
    %c0_i32 = arith.constant 0 : i32
    %c0_i32_0 = arith.constant 0 : i32
    %c0_i32_1 = arith.constant 0 : i32
    return %c0_i32, %c0_i32_0 : i32, i32
  }
  func.func @transform_4(%arg0: i32) -> (i32, i32) {
    %c0_i32 = arith.constant 0 : i32
    %c0_i32_0 = arith.constant 0 : i32
    %c0_i32_1 = arith.constant 0 : i32
    return %c0_i32, %c0_i32_0 : i32, i32
  }
  func.func @transform_5(%arg0: i32) -> (i32, i32) {
    %c0_i32 = arith.constant 0 : i32
    %c0_i32_0 = arith.constant 0 : i32
    %c0_i32_1 = arith.constant 0 : i32
    return %c0_i32, %c0_i32_0 : i32, i32
  }
  func.func @transform_6(%arg0: i32) -> (i32, i32) {
    %c0_i32 = arith.constant 0 : i32
    %c0_i32_0 = arith.constant 0 : i32
    %c0_i32_1 = arith.constant 0 : i32
    return %c0_i32, %c0_i32_0 : i32, i32
  }
  func.func @transform_7(%arg0: i32) -> (i32, i32) {
    %c0_i32 = arith.constant 0 : i32
    %c0_i32_0 = arith.constant 0 : i32
    return %arg0, %c0_i32 : i32, i32
  }
}

</mosaic_0001>

<llo_original>
// kernel: belief_forward.1
$region0: #{belief_forward.1}
  #allocation0 [shape = 'u32[]', space=smem, size = 0x4, offset = 0x4, fixed_abs, tag = 'smem constant byte address 0x4 - core index']
  #allocation1 [shape = 'u32[72,128]{1,0:T(1,128)}', space=vmem, size = 0x9000, scoped, tag = 'internal scratch']
  %s0 = inlined_call_operand.vmem [shape: f32[1,256], index: 0, kind: input, shape index: {}]
  %s1 = inlined_call_operand.vmem [shape: bf16[256,512], index: 1, kind: input, shape index: {}]
  %s2 = inlined_call_operand.vmem [shape: f32[1,512], index: 2, kind: input, shape index: {}]
  %s3 = inlined_call_operand.vmem [shape: bf16[512,512], index: 3, kind: input, shape index: {}]
  %s4 = inlined_call_operand.vmem [shape: f32[1,512], index: 4, kind: input, shape index: {}]
  %s5 = inlined_call_operand.vmem [shape: bf16[512,128], index: 5, kind: input, shape index: {}]
  %s6 = inlined_call_operand.vmem [shape: f32[1,128], index: 6, kind: input, shape index: {}]
  %s7 = inlined_call_operand.vmem [shape: f32[1,128], index: 7, kind: output, shape index: {}]
  %s8 = sld [smem:[#allocation0]]
  $region38: #{belief_forward.1} parent=0
    _
  %s10 = ssub.s32 1, %s8
  %s11 = scalar_select 0, %s10, %s8
  // Predicated region
  $region2: #{belief_forward.1} parent=0 // pred_check
    _
  $region3: #{belief_forward.1} parent=0 // pred_check_branch
    %13 = sbr.rel (0) target = $region5
  $region4: #{belief_forward.1} parent=0 // pred_region
    _
  $region5: #{belief_forward.1} parent=0 // pred_fallthru
    _
  // Predicated region
  $region6: #{belief_forward.1} parent=0 // pred_check
    _
  $region7: #{belief_forward.1} parent=0 // pred_check_branch
    %15 = sbr.rel (0) target = $region9
  $region8: #{belief_forward.1} parent=0 // pred_region
    _
  $region9: #{belief_forward.1} parent=0 // pred_fallthru
    _
  // Predicated region
  $region10: #{belief_forward.1} parent=0 // pred_check
    _
  $region11: #{belief_forward.1} parent=0 // pred_check_branch
    %17 = sbr.rel (0) target = $region13
  $region12: #{belief_forward.1} parent=0 // pred_region
    _
  $region13: #{belief_forward.1} parent=0 // pred_fallthru
    _
  // Predicated region
  $region14: #{belief_forward.1} parent=0 // pred_check
    _
  $region15: #{belief_forward.1} parent=0 // pred_check_branch
    %19 = sbr.rel (0) target = $region17
  $region16: #{belief_forward.1} parent=0 // pred_region
    _
  $region17: #{belief_forward.1} parent=0 // pred_fallthru
    _
  // Predicated region
  $region18: #{belief_forward.1} parent=0 // pred_check
    _
  $region19: #{belief_forward.1} parent=0 // pred_check_branch
    %21 = sbr.rel (0) target = $region21
  $region20: #{belief_forward.1} parent=0 // pred_region
    _
  $region21: #{belief_forward.1} parent=0 // pred_fallthru
    _
  // Predicated region
  $region22: #{belief_forward.1} parent=0 // pred_check
    _
  $region23: #{belief_forward.1} parent=0 // pred_check_branch
    %23 = sbr.rel (0) target = $region25
  $region24: #{belief_forward.1} parent=0 // pred_region
    _
  $region25: #{belief_forward.1} parent=0 // pred_fallthru
    _
  // Predicated region
  $region26: #{belief_forward.1} parent=0 // pred_check
    _
  $region27: #{belief_forward.1} parent=0 // pred_check_branch
    %25 = sbr.rel (0) target = $region29
  $region28: #{belief_forward.1} parent=0 // pred_region
    _
  $region29: #{belief_forward.1} parent=0 // pred_fallthru
    _
  %v26 = vld [vmem:[%s0] sm:$0x3]
  %v28 = vperm.slane %v26, 0
  %v29 = vperm.slane %v26, 1
  %v32 = vpack.c.bf16 %v28, %v28
  %v33 = vpack.c.bf16 %v29, %v29
  %v34 = vld [vmem:[%s1] sm:$0xff]
  %v35 = vld [vmem:[%s1 + $0x8] sm:$0xff]
  %v36 = vld [vmem:[%s1 + $0x10] sm:$0xff]
  %v37 = vld [vmem:[%s1 + $0x18] sm:$0xff]
  %v38 = vld [vmem:[%s1 + $0x20] sm:$0xff]
  %v39 = vld [vmem:[%s1 + $0x28] sm:$0xff]
  %v40 = vld [vmem:[%s1 + $0x30] sm:$0xff]
  %v41 = vld [vmem:[%s1 + $0x38] sm:$0xff]
  %v42 = vld [vmem:[%s1 + $0x40] sm:$0xff]
  %v43 = vld [vmem:[%s1 + $0x48] sm:$0xff]
  %v44 = vld [vmem:[%s1 + $0x50] sm:$0xff]
  %v45 = vld [vmem:[%s1 + $0x58] sm:$0xff]
  %v46 = vld [vmem:[%s1 + $0x60] sm:$0xff]
  %v47 = vld [vmem:[%s1 + $0x68] sm:$0xff]
  %v48 = vld [vmem:[%s1 + $0x70] sm:$0xff]
  %v49 = vld [vmem:[%s1 + $0x78] sm:$0xff]
  %v50 = vld [vmem:[%s1 + $0x80] sm:$0xff]
  %v51 = vld [vmem:[%s1 + $0x88] sm:$0xff]
  %v52 = vld [vmem:[%s1 + $0x90] sm:$0xff]
  %v53 = vld [vmem:[%s1 + $0x98] sm:$0xff]
  %v54 = vld [vmem:[%s1 + $0xa0] sm:$0xff]
  %v55 = vld [vmem:[%s1 + $0xa8] sm:$0xff]
  %v56 = vld [vmem:[%s1 + $0xb0] sm:$0xff]
  %v57 = vld [vmem:[%s1 + $0xb8] sm:$0xff]
  %v58 = vld [vmem:[%s1 + $0xc0] sm:$0xff]
  %v59 = vld [vmem:[%s1 + $0xc8] sm:$0xff]
  %v60 = vld [vmem:[%s1 + $0xd0] sm:$0xff]
  %v61 = vld [vmem:[%s1 + $0xd8] sm:$0xff]
  %v62 = vld [vmem:[%s1 + $0xe0] sm:$0xff]
  %v63 = vld [vmem:[%s1 + $0xe8] sm:$0xff]
  %v64 = vld [vmem:[%s1 + $0xf0] sm:$0xff]
  %v65 = vld [vmem:[%s1 + $0xf8] sm:$0xff]
  %v66 = vld [vmem:[%s1 + $0x100] sm:$0xff]
  %v67 = vld [vmem:[%s1 + $0x108] sm:$0xff]
  %v68 = vld [vmem:[%s1 + $0x110] sm:$0xff]
  %v69 = vld [vmem:[%s1 + $0x118] sm:$0xff]
  %v70 = vld [vmem:[%s1 + $0x120] sm:$0xff]
  %v71 = vld [vmem:[%s1 + $0x128] sm:$0xff]
  %v72 = vld [vmem:[%s1 + $0x130] sm:$0xff]
  %v73 = vld [vmem:[%s1 + $0x138] sm:$0xff]
  %v74 = vld [vmem:[%s1 + $0x140] sm:$0xff]
  %v75 = vld [vmem:[%s1 + $0x148] sm:$0xff]
  %v76 = vld [vmem:[%s1 + $0x150] sm:$0xff]
  %v77 = vld [vmem:[%s1 + $0x158] sm:$0xff]
  %v78 = vld [vmem:[%s1 + $0x160] sm:$0xff]
  %v79 = vld [vmem:[%s1 + $0x168] sm:$0xff]
  %v80 = vld [vmem:[%s1 + $0x170] sm:$0xff]
  %v81 = vld [vmem:[%s1 + $0x178] sm:$0xff]
  %v82 = vld [vmem:[%s1 + $0x180] sm:$0xff]
  %v83 = vld [vmem:[%s1 + $0x188] sm:$0xff]
  %v84 = vld [vmem:[%s1 + $0x190] sm:$0xff]
  %v85 = vld [vmem:[%s1 + $0x198] sm:$0xff]
  %v86 = vld [vmem:[%s1 + $0x1a0] sm:$0xff]
  %v87 = vld [vmem:[%s1 + $0x1a8] sm:$0xff]
  %v88 = vld [vmem:[%s1 + $0x1b0] sm:$0xff]
  %v89 = vld [vmem:[%s1 + $0x1b8] sm:$0xff]
  %v90 = vld [vmem:[%s1 + $0x1c0] sm:$0xff]
  %v91 = vld [vmem:[%s1 + $0x1c8] sm:$0xff]
  %v92 = vld [vmem:[%s1 + $0x1d0] sm:$0xff]
  %v93 = vld [vmem:[%s1 + $0x1d8] sm:$0xff]
  %v94 = vld [vmem:[%s1 + $0x1e0] sm:$0xff]
  %v95 = vld [vmem:[%s1 + $0x1e8] sm:$0xff]
  %v96 = vld [vmem:[%s1 + $0x1f0] sm:$0xff]
  %v97 = vld [vmem:[%s1 + $0x1f8] sm:$0xff]
  %v98 = vld [vmem:[%s2] sm:$0xf]
  %v163 = vunpack.c.l.b16 %v34
  %v164 = vunpack.c.h.b16 %v34
  %v165 = vunpack.c.l.b16 %v35
  %v166 = vunpack.c.h.b16 %v35
  %v167 = vunpack.c.l.b16 %v36
  %v168 = vunpack.c.h.b16 %v36
  %v169 = vunpack.c.l.b16 %v37
  %v170 = vunpack.c.h.b16 %v37
  %v171 = vunpack.c.l.b16 %v38
  %v172 = vunpack.c.h.b16 %v38
  %v173 = vunpack.c.l.b16 %v39
  %v174 = vunpack.c.h.b16 %v39
  %v175 = vunpack.c.l.b16 %v40
  %v176 = vunpack.c.h.b16 %v40
  %v177 = vunpack.c.l.b16 %v41
  %v178 = vunpack.c.h.b16 %v41
  %v179 = vunpack.c.l.b16 %v42
  %v180 = vunpack.c.h.b16 %v42
  %v181 = vunpack.c.l.b16 %v43
  %v182 = vunpack.c.h.b16 %v43
  %v183 = vunpack.c.l.b16 %v44
  %v184 = vunpack.c.h.b16 %v44
  %v185 = vunpack.c.l.b16 %v45
  %v186 = vunpack.c.h.b16 %v45
  %v187 = vunpack.c.l.b16 %v46
  %v188 = vunpack.c.h.b16 %v46
  %v189 = vunpack.c.l.b16 %v47
  %v190 = vunpack.c.h.b16 %v47
  %v191 = vunpack.c.l.b16 %v48
  %v192 = vunpack.c.h.b16 %v48
  %v193 = vunpack.c.l.b16 %v49
  %v194 = vunpack.c.h.b16 %v49
  %v195 = vunpack.c.l.b16 %v50
  %v196 = vunpack.c.h.b16 %v50
  %v197 = vunpack.c.l.b16 %v51
  %v198 = vunpack.c.h.b16 %v51
  %v199 = vunpack.c.l.b16 %v52
  %v200 = vunpack.c.h.b16 %v52
  %v201 = vunpack.c.l.b16 %v53
  %v202 = vunpack.c.h.b16 %v53
  %v203 = vunpack.c.l.b16 %v54
  %v204 = vunpack.c.h.b16 %v54
  %v205 = vunpack.c.l.b16 %v55
  %v206 = vunpack.c.h.b16 %v55
  %v207 = vunpack.c.l.b16 %v56
  %v208 = vunpack.c.h.b16 %v56
  %v209 = vunpack.c.l.b16 %v57
  %v210 = vunpack.c.h.b16 %v57
  %v211 = vunpack.c.l.b16 %v58
  %v212 = vunpack.c.h.b16 %v58
  %v213 = vunpack.c.l.b16 %v59
  %v214 = vunpack.c.h.b16 %v59
  %v215 = vunpack.c.l.b16 %v60
  %v216 = vunpack.c.h.b16 %v60
  %v217 = vunpack.c.l.b16 %v61
  %v218 = vunpack.c.h.b16 %v61
  %v219 = vunpack.c.l.b16 %v62
  %v220 = vunpack.c.h.b16 %v62
  %v221 = vunpack.c.l.b16 %v63
  %v222 = vunpack.c.h.b16 %v63
  %v223 = vunpack.c.l.b16 %v64
  %v224 = vunpack.c.h.b16 %v64
  %v225 = vunpack.c.l.b16 %v65
  %v226 = vunpack.c.h.b16 %v65
  %v227 = vunpack.c.l.b16 %v66
  %v228 = vunpack.c.h.b16 %v66
  %v229 = vunpack.c.l.b16 %v67
  %v230 = vunpack.c.h.b16 %v67
  %v231 = vunpack.c.l.b16 %v68
  %v232 = vunpack.c.h.b16 %v68
  %v233 = vunpack.c.l.b16 %v69
  %v234 = vunpack.c.h.b16 %v69
  %v235 = vunpack.c.l.b16 %v70
  %v236 = vunpack.c.h.b16 %v70
  %v237 = vunpack.c.l.b16 %v71
  %v238 = vunpack.c.h.b16 %v71
  %v239 = vunpack.c.l.b16 %v72
  %v240 = vunpack.c.h.b16 %v72
  %v241 = vunpack.c.l.b16 %v73
  %v242 = vunpack.c.h.b16 %v73
  %v243 = vunpack.c.l.b16 %v74
  %v244 = vunpack.c.h.b16 %v74
  %v245 = vunpack.c.l.b16 %v75
  %v246 = vunpack.c.h.b16 %v75
  %v247 = vunpack.c.l.b16 %v76
  %v248 = vunpack.c.h.b16 %v76
  %v249 = vunpack.c.l.b16 %v77
  %v250 = vunpack.c.h.b16 %v77
  %v251 = vunpack.c.l.b16 %v78
  %v252 = vunpack.c.h.b16 %v78
  %v253 = vunpack.c.l.b16 %v79
  %v254 = vunpack.c.h.b16 %v79
  %v255 = vunpack.c.l.b16 %v80
  %v256 = vunpack.c.h.b16 %v80
  %v257 = vunpack.c.l.b16 %v81
  %v258 = vunpack.c.h.b16 %v81
  %v259 = vunpack.c.l.b16 %v82
  %v260 = vunpack.c.h.b16 %v82
  %v261 = vunpack.c.l.b16 %v83
  %v262 = vunpack.c.h.b16 %v83
  %v263 = vunpack.c.l.b16 %v84
  %v264 = vunpack.c.h.b16 %v84
  %v265 = vunpack.c.l.b16 %v85
  %v266 = vunpack.c.h.b16 %v85
  %v267 = vunpack.c.l.b16 %v86
  %v268 = vunpack.c.h.b16 %v86
  %v269 = vunpack.c.l.b16 %v87
  %v270 = vunpack.c.h.b16 %v87
  %v271 = vunpack.c.l.b16 %v88
  %v272 = vunpack.c.h.b16 %v88
  %v273 = vunpack.c.l.b16 %v89
  %v274 = vunpack.c.h.b16 %v89
  %v275 = vunpack.c.l.b16 %v90
  %v276 = vunpack.c.h.b16 %v90
  %v277 = vunpack.c.l.b16 %v91
  %v278 = vunpack.c.h.b16 %v91
  %v279 = vunpack.c.l.b16 %v92
  %v280 = vunpack.c.h.b16 %v92
  %v281 = vunpack.c.l.b16 %v93
  %v282 = vunpack.c.h.b16 %v93
  %v283 = vunpack.c.l.b16 %v94
  %v284 = vunpack.c.h.b16 %v94
  %v285 = vunpack.c.l.b16 %v95
  %v286 = vunpack.c.h.b16 %v95
  %v287 = vunpack.c.l.b16 %v96
  %v288 = vunpack.c.h.b16 %v96
  %v289 = vunpack.c.l.b16 %v97
  %v290 = vunpack.c.h.b16 %v97
  %v291 = vpack.c.b16 %v167, %v163
  %v292 = vpack.c.b16 %v168, %v164
  %v293 = vpack.c.b16 %v169, %v165
  %v294 = vpack.c.b16 %v170, %v166
  %v295 = vpack.c.b16 %v175, %v171
  %v296 = vpack.c.b16 %v176, %v172
  %v297 = vpack.c.b16 %v177, %v173
  %v298 = vpack.c.b16 %v178, %v174
  %v299 = vpack.c.b16 %v183, %v179
  %v300 = vpack.c.b16 %v184, %v180
  %v301 = vpack.c.b16 %v185, %v181
  %v302 = vpack.c.b16 %v186, %v182
  %v303 = vpack.c.b16 %v191, %v187
  %v304 = vpack.c.b16 %v192, %v188
  %v305 = vpack.c.b16 %v193, %v189
  %v306 = vpack.c.b16 %v194, %v190
  %v307 = vpack.c.b16 %v199, %v195
  %v308 = vpack.c.b16 %v200, %v196
  %v309 = vpack.c.b16 %v201, %v197
  %v310 = vpack.c.b16 %v202, %v198
  %v311 = vpack.c.b16 %v207, %v203
  %v312 = vpack.c.b16 %v208, %v204
  %v313 = vpack.c.b16 %v209, %v205
  %v314 = vpack.c.b16 %v210, %v206
  %v315 = vpack.c.b16 %v215, %v211
  %v316 = vpack.c.b16 %v216, %v212
  %v317 = vpack.c.b16 %v217, %v213
  %v318 = vpack.c.b16 %v218, %v214
  %v319 = vpack.c.b16 %v223, %v219
  %v320 = vpack.c.b16 %v224, %v220
  %v321 = vpack.c.b16 %v225, %v221
  %v322 = vpack.c.b16 %v226, %v222
  %v323 = vpack.c.b16 %v231, %v227
  %v324 = vpack.c.b16 %v232, %v228
  %v325 = vpack.c.b16 %v233, %v229
  %v326 = vpack.c.b16 %v234, %v230
  %v327 = vpack.c.b16 %v239, %v235
  %v328 = vpack.c.b16 %v240, %v236
  %v329 = vpack.c.b16 %v241, %v237
  %v330 = vpack.c.b16 %v242, %v238
  %v331 = vpack.c.b16 %v247, %v243
  %v332 = vpack.c.b16 %v248, %v244
  %v333 = vpack.c.b16 %v249, %v245
  %v334 = vpack.c.b16 %v250, %v246
  %v335 = vpack.c.b16 %v255, %v251
  %v336 = vpack.c.b16 %v256, %v252
  %v337 = vpack.c.b16 %v257, %v253
  %v338 = vpack.c.b16 %v258, %v254
  %v339 = vpack.c.b16 %v263, %v259
  %v340 = vpack.c.b16 %v264, %v260
  %v341 = vpack.c.b16 %v265, %v261
  %v342 = vpack.c.b16 %v266, %v262
  %v343 = vpack.c.b16 %v271, %v267
  %v344 = vpack.c.b16 %v272, %v268
  %v345 = vpack.c.b16 %v273, %v269
  %v346 = vpack.c.b16 %v274, %v270
  %v347 = vpack.c.b16 %v279, %v275
  %v348 = vpack.c.b16 %v280, %v276
  %v349 = vpack.c.b16 %v281, %v277
  %v350 = vpack.c.b16 %v282, %v278
  %v351 = vpack.c.b16 %v287, %v283
  %v352 = vpack.c.b16 %v288, %v284
  %v353 = vpack.c.b16 %v289, %v285
  %v354 = vpack.c.b16 %v290, %v286
  %v420 = vperm.slane %v98, 0
  %v421 = vperm.slane %v98, 1
  %v422 = vperm.slane %v98, 2
  %v423 = vperm.slane %v98, 3
  %428 = vmatpush.bf16.msra.mxu0 %v319
  %429 = vmatpush.bf16.msra.mxu0 %v315
  %430 = vmatpush.bf16.msra.mxu0 %v311
  %431 = vmatpush.bf16.msra.mxu0 %v307
  %432 = vmatpush.bf16.msra.mxu0 %v303
  %433 = vmatpush.bf16.msra.mxu0 %v299
  %434 = vmatpush.bf16.msra.mxu0 %v295
  %435 = vmatpush.bf16.msra.mxu0 %v291
  %436 = vmatmul.bf16.gmra.mxu0 %v32
  %v437 = vpop.f32.mrf.mxu0
  %v438 = vadd.f32 %v420, %v437
  %v439 = vpop.f32.mrf.mxu0
  %440 = vdwg.mxu0
  %441 = vmatpush.bf16.msra.mxu0 %v351
  %442 = vmatpush.bf16.msra.mxu0 %v347
  %443 = vmatpush.bf16.msra.mxu0 %v343
  %444 = vmatpush.bf16.msra.mxu0 %v339
  %445 = vmatpush.bf16.msra.mxu0 %v335
  %446 = vmatpush.bf16.msra.mxu0 %v331
  %447 = vmatpush.bf16.msra.mxu0 %v327
  %448 = vmatpush.bf16.msra.mxu0 %v323
  %449 = vmatmul.bf16.gmra.mxu0 %v33
  %v450 = vpop.f32.mrf.mxu0
  %v451 = vadd.f32 %v438, %v450
  %v452 = vpop.f32.mrf.mxu0
  %453 = vdwg.mxu0
  %454 = vmatpush.bf16.msra.mxu0 %v320
  %455 = vmatpush.bf16.msra.mxu0 %v316
  %456 = vmatpush.bf16.msra.mxu0 %v312
  %457 = vmatpush.bf16.msra.mxu0 %v308
  %458 = vmatpush.bf16.msra.mxu0 %v304
  %459 = vmatpush.bf16.msra.mxu0 %v300
  %460 = vmatpush.bf16.msra.mxu0 %v296
  %461 = vmatpush.bf16.msra.mxu0 %v292
  %462 = vmatmul.bf16.gmra.mxu0 %v32
  %v463 = vpop.f32.mrf.mxu0
  %v464 = vadd.f32 %v421, %v463
  %v465 = vpop.f32.mrf.mxu0
  %466 = vdwg.mxu0
  %467 = vmatpush.bf16.msra.mxu0 %v352
  %468 = vmatpush.bf16.msra.mxu0 %v348
  %469 = vmatpush.bf16.msra.mxu0 %v344
  %470 = vmatpush.bf16.msra.mxu0 %v340
  %471 = vmatpush.bf16.msra.mxu0 %v336
  %472 = vmatpush.bf16.msra.mxu0 %v332
  %473 = vmatpush.bf16.msra.mxu0 %v328
  %474 = vmatpush.bf16.msra.mxu0 %v324
  %475 = vmatmul.bf16.gmra.mxu0 %v33
  %v476 = vpop.f32.mrf.mxu0
  %v477 = vadd.f32 %v464, %v476
  %v478 = vpop.f32.mrf.mxu0
  %479 = vdwg.mxu0
  %480 = vmatpush.bf16.msra.mxu0 %v321
  %481 = vmatpush.bf16.msra.mxu0 %v317
  %482 = vmatpush.bf16.msra.mxu0 %v313
  %483 = vmatpush.bf16.msra.mxu0 %v309
  %484 = vmatpush.bf16.msra.mxu0 %v305
  %485 = vmatpush.bf16.msra.mxu0 %v301
  %486 = vmatpush.bf16.msra.mxu0 %v297
  %487 = vmatpush.bf16.msra.mxu0 %v293
  %488 = vmatmul.bf16.gmra.mxu0 %v32
  %v489 = vpop.f32.mrf.mxu0
  %v490 = vadd.f32 %v422, %v489
  %v491 = vpop.f32.mrf.mxu0
  %492 = vdwg.mxu0
  %493 = vmatpush.bf16.msra.mxu0 %v353
  %494 = vmatpush.bf16.msra.mxu0 %v349
  %495 = vmatpush.bf16.msra.mxu0 %v345
  %496 = vmatpush.bf16.msra.mxu0 %v341
  %497 = vmatpush.bf16.msra.mxu0 %v337
  %498 = vmatpush.bf16.msra.mxu0 %v333
  %499 = vmatpush.bf16.msra.mxu0 %v329
  %500 = vmatpush.bf16.msra.mxu0 %v325
  %501 = vmatmul.bf16.gmra.mxu0 %v33
  %v502 = vpop.f32.mrf.mxu0
  %v503 = vadd.f32 %v490, %v502
  %v504 = vpop.f32.mrf.mxu0
  %505 = vdwg.mxu0
  %506 = vmatpush.bf16.msra.mxu0 %v322
  %507 = vmatpush.bf16.msra.mxu0 %v318
  %508 = vmatpush.bf16.msra.mxu0 %v314
  %509 = vmatpush.bf16.msra.mxu0 %v310
  %510 = vmatpush.bf16.msra.mxu0 %v306
  %511 = vmatpush.bf16.msra.mxu0 %v302
  %512 = vmatpush.bf16.msra.mxu0 %v298
  %513 = vmatpush.bf16.msra.mxu0 %v294
  %514 = vmatmul.bf16.gmra.mxu0 %v32
  %v515 = vpop.f32.mrf.mxu0
  %v516 = vadd.f32 %v423, %v515
  %v517 = vpop.f32.mrf.mxu0
  %518 = vdwg.mxu0
  %519 = vmatpush.bf16.msra.mxu0 %v354
  %520 = vmatpush.bf16.msra.mxu0 %v350
  %521 = vmatpush.bf16.msra.mxu0 %v346
  %522 = vmatpush.bf16.msra.mxu0 %v342
  %523 = vmatpush.bf16.msra.mxu0 %v338
  %524 = vmatpush.bf16.msra.mxu0 %v334
  %525 = vmatpush.bf16.msra.mxu0 %v330
  %526 = vmatpush.bf16.msra.mxu0 %v326
  %527 = vmatmul.bf16.gmra.mxu0 %v33
  %v528 = vpop.f32.mrf.mxu0
  %v529 = vadd.f32 %v516, %v528
  %v530 = vpop.f32.mrf.mxu0
  %531 = vdwg.mxu0
  %v532 = vmax.f32 %v451, 0.0
  %v533 = vmax.f32 %v477, 0.0
  %v534 = vmax.f32 %v503, 0.0
  %v535 = vmax.f32 %v529, 0.0
  %v536 = vpack.c.bf16 %v532, %v532
  %v537 = vpack.c.bf16 %v533, %v533
  %v538 = vpack.c.bf16 %v534, %v534
  %v539 = vpack.c.bf16 %v535, %v535
  %v540 = vld [vmem:[%s3] sm:$0xff]
  %v541 = vld [vmem:[%s3 + $0x8] sm:$0xff]
  %v542 = vld [vmem:[%s3 + $0x10] sm:$0xff]
  %v543 = vld [vmem:[%s3 + $0x18] sm:$0xff]
  %v544 = vld [vmem:[%s3 + $0x20] sm:$0xff]
  %v545 = vld [vmem:[%s3 + $0x28] sm:$0xff]
  %v546 = vld [vmem:[%s3 + $0x30] sm:$0xff]
  %v547 = vld [vmem:[%s3 + $0x38] sm:$0xff]
  %v548 = vld [vmem:[%s3 + $0x40] sm:$0xff]
  %v549 = vld [vmem:[%s3 + $0x48] sm:$0xff]
  %v550 = vld [vmem:[%s3 + $0x50] sm:$0xff]
  %v551 = vld [vmem:[%s3 + $0x58] sm:$0xff]
  %v552 = vld [vmem:[%s3 + $0x60] sm:$0xff]
  %v553 = vld [vmem:[%s3 + $0x68] sm:$0xff]
  %v554 = vld [vmem:[%s3 + $0x70] sm:$0xff]
  %v555 = vld [vmem:[%s3 + $0x78] sm:$0xff]
  %v556 = vld [vmem:[%s3 + $0x80] sm:$0xff]
  %v557 = vld [vmem:[%s3 + $0x88] sm:$0xff]
  %v558 = vld [vmem:[%s3 + $0x90] sm:$0xff]
  %v559 = vld [vmem:[%s3 + $0x98] sm:$0xff]
  %v560 = vld [vmem:[%s3 + $0xa0] sm:$0xff]
  %v561 = vld [vmem:[%s3 + $0xa8] sm:$0xff]
  %v562 = vld [vmem:[%s3 + $0xb0] sm:$0xff]
  %v563 = vld [vmem:[%s3 + $0xb8] sm:$0xff]
  %v564 = vld [vmem:[%s3 + $0xc0] sm:$0xff]
  %v565 = vld [vmem:[%s3 + $0xc8] sm:$0xff]
  %v566 = vld [vmem:[%s3 + $0xd0] sm:$0xff]
  %v567 = vld [vmem:[%s3 + $0xd8] sm:$0xff]
  %v568 = vld [vmem:[%s3 + $0xe0] sm:$0xff]
  %v569 = vld [vmem:[%s3 + $0xe8] sm:$0xff]
  %v570 = vld [vmem:[%s3 + $0xf0] sm:$0xff]
  %v571 = vld [vmem:[%s3 + $0xf8] sm:$0xff]
  %v572 = vld [vmem:[%s3 + $0x100] sm:$0xff]
  %v573 = vld [vmem:[%s3 + $0x108] sm:$0xff]
  %v574 = vld [vmem:[%s3 + $0x110] sm:$0xff]
  %v575 = vld [vmem:[%s3 + $0x118] sm:$0xff]
  %v576 = vld [vmem:[%s3 + $0x120] sm:$0xff]
  %v577 = vld [vmem:[%s3 + $0x128] sm:$0xff]
  %v578 = vld [vmem:[%s3 + $0x130] sm:$0xff]
  %v579 = vld [vmem:[%s3 + $0x138] sm:$0xff]
  %v580 = vld [vmem:[%s3 + $0x140] sm:$0xff]
  %v581 = vld [vmem:[%s3 + $0x148] sm:$0xff]
  %v582 = vld [vmem:[%s3 + $0x150] sm:$0xff]
  %v583 = vld [vmem:[%s3 + $0x158] sm:$0xff]
  %v584 = vld [vmem:[%s3 + $0x160] sm:$0xff]
  %v585 = vld [vmem:[%s3 + $0x168] sm:$0xff]
  %v586 = vld [vmem:[%s3 + $0x170] sm:$0xff]
  %v587 = vld [vmem:[%s3 + $0x178] sm:$0xff]
  %v588 = vld [vmem:[%s3 + $0x180] sm:$0xff]
  %v589 = vld [vmem:[%s3 + $0x188] sm:$0xff]
  %v590 = vld [vmem:[%s3 + $0x190] sm:$0xff]
  %v591 = vld [vmem:[%s3 + $0x198] sm:$0xff]
  %v592 = vld [vmem:[%s3 + $0x1a0] sm:$0xff]
  %v593 = vld [vmem:[%s3 + $0x1a8] sm:$0xff]
  %v594 = vld [vmem:[%s3 + $0x1b0] sm:$0xff]
  %v595 = vld [vmem:[%s3 + $0x1b8] sm:$0xff]
  %v596 = vld [vmem:[%s3 + $0x1c0] sm:$0xff]
  %v597 = vld [vmem:[%s3 + $0x1c8] sm:$0xff]
  %v598 = vld [vmem:[%s3 + $0x1d0] sm:$0xff]
  %v599 = vld [vmem:[%s3 + $0x1d8] sm:$0xff]
  %v600 = vld [vmem:[%s3 + $0x1e0] sm:$0xff]
  %v601 = vld [vmem:[%s3 + $0x1e8] sm:$0xff]
  %v602 = vld [vmem:[%s3 + $0x1f0] sm:$0xff]
  %v603 = vld [vmem:[%s3 + $0x1f8] sm:$0xff]
  %v604 = vld [vmem:[%s3 + $0x200] sm:$0xff]
  %v605 = vld [vmem:[%s3 + $0x208] sm:$0xff]
  %v606 = vld [vmem:[%s3 + $0x210] sm:$0xff]
  %v607 = vld [vmem:[%s3 + $0x218] sm:$0xff]
  %v608 = vld [vmem:[%s3 + $0x220] sm:$0xff]
  %v609 = vld [vmem:[%s3 + $0x228] sm:$0xff]
  %v610 = vld [vmem:[%s3 + $0x230] sm:$0xff]
  %v611 = vld [vmem:[%s3 + $0x238] sm:$0xff]
  %v612 = vld [vmem:[%s3 + $0x240] sm:$0xff]
  %v613 = vld [vmem:[%s3 + $0x248] sm:$0xff]
  %v614 = vld [vmem:[%s3 + $0x250] sm:$0xff]
  %v615 = vld [vmem:[%s3 + $0x258] sm:$0xff]
  %v616 = vld [vmem:[%s3 + $0x260] sm:$0xff]
  %v617 = vld [vmem:[%s3 + $0x268] sm:$0xff]
  %v618 = vld [vmem:[%s3 + $0x270] sm:$0xff]
  %v619 = vld [vmem:[%s3 + $0x278] sm:$0xff]
  %v620 = vld [vmem:[%s3 + $0x280] sm:$0xff]
  %v621 = vld [vmem:[%s3 + $0x288] sm:$0xff]
  %v622 = vld [vmem:[%s3 + $0x290] sm:$0xff]
  %v623 = vld [vmem:[%s3 + $0x298] sm:$0xff]
  %v624 = vld [vmem:[%s3 + $0x2a0] sm:$0xff]
  %v625 = vld [vmem:[%s3 + $0x2a8] sm:$0xff]
  %v626 = vld [vmem:[%s3 + $0x2b0] sm:$0xff]
  %v627 = vld [vmem:[%s3 + $0x2b8] sm:$0xff]
  %v628 = vld [vmem:[%s3 + $0x2c0] sm:$0xff]
  %v629 = vld [vmem:[%s3 + $0x2c8] sm:$0xff]
  %v630 = vld [vmem:[%s3 + $0x2d0] sm:$0xff]
  %v631 = vld [vmem:[%s3 + $0x2d8] sm:$0xff]
  %v632 = vld [vmem:[%s3 + $0x2e0] sm:$0xff]
  %v633 = vld [vmem:[%s3 + $0x2e8] sm:$0xff]
  %v634 = vld [vmem:[%s3 + $0x2f0] sm:$0xff]
  %v635 = vld [vmem:[%s3 + $0x2f8] sm:$0xff]
  %v636 = vld [vmem:[%s3 + $0x300] sm:$0xff]
  %v637 = vld [vmem:[%s3 + $0x308] sm:$0xff]
  %v638 = vld [vmem:[%s3 + $0x310] sm:$0xff]
  %v639 = vld [vmem:[%s3 + $0x318] sm:$0xff]
  %v640 = vld [vmem:[%s3 + $0x320] sm:$0xff]
  %v641 = vld [vmem:[%s3 + $0x328] sm:$0xff]
  %v642 = vld [vmem:[%s3 + $0x330] sm:$0xff]
  %v643 = vld [vmem:[%s3 + $0x338] sm:$0xff]
  %v644 = vld [vmem:[%s3 + $0x340] sm:$0xff]
  %v645 = vld [vmem:[%s3 + $0x348] sm:$0xff]
  %v646 = vld [vmem:[%s3 + $0x350] sm:$0xff]
  %v647 = vld [vmem:[%s3 + $0x358] sm:$0xff]
  %v648 = vld [vmem:[%s3 + $0x360] sm:$0xff]
  %v649 = vld [vmem:[%s3 + $0x368] sm:$0xff]
  %v650 = vld [vmem:[%s3 + $0x370] sm:$0xff]
  %v651 = vld [vmem:[%s3 + $0x378] sm:$0xff]
  %v652 = vld [vmem:[%s3 + $0x380] sm:$0xff]
  %v653 = vld [vmem:[%s3 + $0x388] sm:$0xff]
  %v654 = vld [vmem:[%s3 + $0x390] sm:$0xff]
  %v655 = vld [vmem:[%s3 + $0x398] sm:$0xff]
  %v656 = vld [vmem:[%s3 + $0x3a0] sm:$0xff]
  %v657 = vld [vmem:[%s3 + $0x3a8] sm:$0xff]
  %v658 = vld [vmem:[%s3 + $0x3b0] sm:$0xff]
  %v659 = vld [vmem:[%s3 + $0x3b8] sm:$0xff]
  %v660 = vld [vmem:[%s3 + $0x3c0] sm:$0xff]
  %v661 = vld [vmem:[%s3 + $0x3c8] sm:$0xff]
  %v662 = vld [vmem:[%s3 + $0x3d0] sm:$0xff]
  %v663 = vld [vmem:[%s3 + $0x3d8] sm:$0xff]
  %v664 = vld [vmem:[%s3 + $0x3e0] sm:$0xff]
  %v665 = vld [vmem:[%s3 + $0x3e8] sm:$0xff]
  %v666 = vld [vmem:[%s3 + $0x3f0] sm:$0xff]
  %v667 = vld [vmem:[%s3 + $0x3f8] sm:$0xff]
  %v668 = vld [vmem:[%s4] sm:$0xf]
  %v797 = vunpack.c.l.b16 %v540
  %v798 = vunpack.c.h.b16 %v540
  %v799 = vunpack.c.l.b16 %v541
  %v800 = vunpack.c.h.b16 %v541
  %v801 = vunpack.c.l.b16 %v542
  %v802 = vunpack.c.h.b16 %v542
  %v803 = vunpack.c.l.b16 %v543
  %v804 = vunpack.c.h.b16 %v543
  %v805 = vunpack.c.l.b16 %v544
  %v806 = vunpack.c.h.b16 %v544
  %v807 = vunpack.c.l.b16 %v545
  %v808 = vunpack.c.h.b16 %v545
  %v809 = vunpack.c.l.b16 %v546
  %v810 = vunpack.c.h.b16 %v546
  %v811 = vunpack.c.l.b16 %v547
  %v812 = vunpack.c.h.b16 %v547
  %v813 = vunpack.c.l.b16 %v548
  %v814 = vunpack.c.h.b16 %v548
  %v815 = vunpack.c.l.b16 %v549
  %v816 = vunpack.c.h.b16 %v549
  %v817 = vunpack.c.l.b16 %v550
  %v818 = vunpack.c.h.b16 %v550
  %v819 = vunpack.c.l.b16 %v551
  %v820 = vunpack.c.h.b16 %v551
  %v821 = vunpack.c.l.b16 %v552
  %v822 = vunpack.c.h.b16 %v552
  %v823 = vunpack.c.l.b16 %v553
  %v824 = vunpack.c.h.b16 %v553
  %v825 = vunpack.c.l.b16 %v554
  %v826 = vunpack.c.h.b16 %v554
  %v827 = vunpack.c.l.b16 %v555
  %v828 = vunpack.c.h.b16 %v555
  %v829 = vunpack.c.l.b16 %v556
  %v830 = vunpack.c.h.b16 %v556
  %v831 = vunpack.c.l.b16 %v557
  %v832 = vunpack.c.h.b16 %v557
  %v833 = vunpack.c.l.b16 %v558
  %v834 = vunpack.c.h.b16 %v558
  %v835 = vunpack.c.l.b16 %v559
  %v836 = vunpack.c.h.b16 %v559
  %v837 = vunpack.c.l.b16 %v560
  %v838 = vunpack.c.h.b16 %v560
  %v839 = vunpack.c.l.b16 %v561
  %v840 = vunpack.c.h.b16 %v561
  %v841 = vunpack.c.l.b16 %v562
  %v842 = vunpack.c.h.b16 %v562
  %v843 = vunpack.c.l.b16 %v563
  %v844 = vunpack.c.h.b16 %v563
  %v845 = vunpack.c.l.b16 %v564
  %v846 = vunpack.c.h.b16 %v564
  %v847 = vunpack.c.l.b16 %v565
  %v848 = vunpack.c.h.b16 %v565
  %v849 = vunpack.c.l.b16 %v566
  %v850 = vunpack.c.h.b16 %v566
  %v851 = vunpack.c.l.b16 %v567
  %v852 = vunpack.c.h.b16 %v567
  %v853 = vunpack.c.l.b16 %v568
  %v854 = vunpack.c.h.b16 %v568
  %v855 = vunpack.c.l.b16 %v569
  %v856 = vunpack.c.h.b16 %v569
  %v857 = vunpack.c.l.b16 %v570
  %v858 = vunpack.c.h.b16 %v570
  %v859 = vunpack.c.l.b16 %v571
  %v860 = vunpack.c.h.b16 %v571
  %v861 = vunpack.c.l.b16 %v572
  %v862 = vunpack.c.h.b16 %v572
  %v863 = vunpack.c.l.b16 %v573
  %v864 = vunpack.c.h.b16 %v573
  %v865 = vunpack.c.l.b16 %v574
  %v866 = vunpack.c.h.b16 %v574
  %v867 = vunpack.c.l.b16 %v575
  %v868 = vunpack.c.h.b16 %v575
  %v869 = vunpack.c.l.b16 %v576
  %v870 = vunpack.c.h.b16 %v576
  %v871 = vunpack.c.l.b16 %v577
  %v872 = vunpack.c.h.b16 %v577
  %v873 = vunpack.c.l.b16 %v578
  %v874 = vunpack.c.h.b16 %v578
  %v875 = vunpack.c.l.b16 %v579
  %v876 = vunpack.c.h.b16 %v579
  %v877 = vunpack.c.l.b16 %v580
  %v878 = vunpack.c.h.b16 %v580
  %v879 = vunpack.c.l.b16 %v581
  %v880 = vunpack.c.h.b16 %v581
  %v881 = vunpack.c.l.b16 %v582
  %v882 = vunpack.c.h.b16 %v582
  %v883 = vunpack.c.l.b16 %v583
  %v884 = vunpack.c.h.b16 %v583
  %v885 = vunpack.c.l.b16 %v584
  %v886 = vunpack.c.h.b16 %v584
  %v887 = vunpack.c.l.b16 %v585
  %v888 = vunpack.c.h.b16 %v585
  %v889 = vunpack.c.l.b16 %v586
  %v890 = vunpack.c.h.b16 %v586
  %v891 = vunpack.c.l.b16 %v587
  %v892 = vunpack.c.h.b16 %v587
  %v893 = vunpack.c.l.b16 %v588
  %v894 = vunpack.c.h.b16 %v588
  %v895 = vunpack.c.l.b16 %v589
  %v896 = vunpack.c.h.b16 %v589
  %v897 = vunpack.c.l.b16 %v590
  %v898 = vunpack.c.h.b16 %v590
  %v899 = vunpack.c.l.b16 %v591
  %v900 = vunpack.c.h.b16 %v591
  %v901 = vunpack.c.l.b16 %v592
  %v902 = vunpack.c.h.b16 %v592
  %v903 = vunpack.c.l.b16 %v593
  %v904 = vunpack.c.h.b16 %v593
  %v905 = vunpack.c.l.b16 %v594
  %v906 = vunpack.c.h.b16 %v594
  %v907 = vunpack.c.l.b16 %v595
  %v908 = vunpack.c.h.b16 %v595
  %v909 = vunpack.c.l.b16 %v596
  %v910 = vunpack.c.h.b16 %v596
  %v911 = vunpack.c.l.b16 %v597
  %v912 = vunpack.c.h.b16 %v597
  %v913 = vunpack.c.l.b16 %v598
  %v914 = vunpack.c.h.b16 %v598
  %v915 = vunpack.c.l.b16 %v599
  %v916 = vunpack.c.h.b16 %v599
  %v917 = vunpack.c.l.b16 %v600
  %v918 = vunpack.c.h.b16 %v600
  %v919 = vunpack.c.l.b16 %v601
  %v920 = vunpack.c.h.b16 %v601
  %v921 = vunpack.c.l.b16 %v602
  %v922 = vunpack.c.h.b16 %v602
  %v923 = vunpack.c.l.b16 %v603
  %v924 = vunpack.c.h.b16 %v603
  %v925 = vunpack.c.l.b16 %v604
  %v926 = vunpack.c.h.b16 %v604
  %v927 = vunpack.c.l.b16 %v605
  %v928 = vunpack.c.h.b16 %v605
  %v929 = vunpack.c.l.b16 %v606
  %v930 = vunpack.c.h.b16 %v606
  %v931 = vunpack.c.l.b16 %v607
  %v932 = vunpack.c.h.b16 %v607
  %v933 = vunpack.c.l.b16 %v608
  %v934 = vunpack.c.h.b16 %v608
  %v935 = vunpack.c.l.b16 %v609
  %v936 = vunpack.c.h.b16 %v609
  %v937 = vunpack.c.l.b16 %v610
  %v938 = vunpack.c.h.b16 %v610
  %v939 = vunpack.c.l.b16 %v611
  %v940 = vunpack.c.h.b16 %v611
  %v941 = vunpack.c.l.b16 %v612
  %v942 = vunpack.c.h.b16 %v612
  %v943 = vunpack.c.l.b16 %v613
  %v944 = vunpack.c.h.b16 %v613
  %v945 = vunpack.c.l.b16 %v614
  %v946 = vunpack.c.h.b16 %v614
  %v947 = vunpack.c.l.b16 %v615
  %v948 = vunpack.c.h.b16 %v615
  %v949 = vunpack.c.l.b16 %v616
  %v950 = vunpack.c.h.b16 %v616
  %v951 = vunpack.c.l.b16 %v617
  %v952 = vunpack.c.h.b16 %v617
  %v953 = vunpack.c.l.b16 %v618
  %v954 = vunpack.c.h.b16 %v618
  %v955 = vunpack.c.l.b16 %v619
  %v956 = vunpack.c.h.b16 %v619
  %v957 = vunpack.c.l.b16 %v620
  %v958 = vunpack.c.h.b16 %v620
  %v959 = vunpack.c.l.b16 %v621
  %v960 = vunpack.c.h.b16 %v621
  %v961 = vunpack.c.l.b16 %v622
  %v962 = vunpack.c.h.b16 %v622
  %v963 = vunpack.c.l.b16 %v623
  %v964 = vunpack.c.h.b16 %v623
  %v965 = vunpack.c.l.b16 %v624
  %v966 = vunpack.c.h.b16 %v624
  %v967 = vunpack.c.l.b16 %v625
  %v968 = vunpack.c.h.b16 %v625
  %v969 = vunpack.c.l.b16 %v626
  %v970 = vunpack.c.h.b16 %v626
  %v971 = vunpack.c.l.b16 %v627
  %v972 = vunpack.c.h.b16 %v627
  %v973 = vunpack.c.l.b16 %v628
  %v974 = vunpack.c.h.b16 %v628
  %v975 = vunpack.c.l.b16 %v629
  %v976 = vunpack.c.h.b16 %v629
  %v977 = vunpack.c.l.b16 %v630
  %v978 = vunpack.c.h.b16 %v630
  %v979 = vunpack.c.l.b16 %v631
  %v980 = vunpack.c.h.b16 %v631
  %v981 = vunpack.c.l.b16 %v632
  %v982 = vunpack.c.h.b16 %v632
  %v983 = vunpack.c.l.b16 %v633
  %v984 = vunpack.c.h.b16 %v633
  %v985 = vunpack.c.l.b16 %v634
  %v986 = vunpack.c.h.b16 %v634
  %v987 = vunpack.c.l.b16 %v635
  %v988 = vunpack.c.h.b16 %v635
  %v989 = vunpack.c.l.b16 %v636
  %v990 = vunpack.c.h.b16 %v636
  %v991 = vunpack.c.l.b16 %v637
  %v992 = vunpack.c.h.b16 %v637
  %v993 = vunpack.c.l.b16 %v638
  %v994 = vunpack.c.h.b16 %v638
  %v995 = vunpack.c.l.b16 %v639
  %v996 = vunpack.c.h.b16 %v639
  %v997 = vunpack.c.l.b16 %v640
  %v998 = vunpack.c.h.b16 %v640
  %v999 = vunpack.c.l.b16 %v641
  %v1000 = vunpack.c.h.b16 %v641
  %v1001 = vunpack.c.l.b16 %v642
  %v1002 = vunpack.c.h.b16 %v642
  %v1003 = vunpack.c.l.b16 %v643
  %v1004 = vunpack.c.h.b16 %v643
  %v1005 = vunpack.c.l.b16 %v644
  %v1006 = vunpack.c.h.b16 %v644
  %v1007 = vunpack.c.l.b16 %v645
  %v1008 = vunpack.c.h.b16 %v645
  %v1009 = vunpack.c.l.b16 %v646
  %v1010 = vunpack.c.h.b16 %v646
  %v1011 = vunpack.c.l.b16 %v647
  %v1012 = vunpack.c.h.b16 %v647
  %v1013 = vunpack.c.l.b16 %v648
  %v1014 = vunpack.c.h.b16 %v648
  %v1015 = vunpack.c.l.b16 %v649
  %v1016 = vunpack.c.h.b16 %v649
  %v1017 = vunpack.c.l.b16 %v650
  %v1018 = vunpack.c.h.b16 %v650
  %v1019 = vunpack.c.l.b16 %v651
  %v1020 = vunpack.c.h.b16 %v651
  %v1021 = vunpack.c.l.b16 %v652
  %v1022 = vunpack.c.h.b16 %v652
  %v1023 = vunpack.c.l.b16 %v653
  %v1024 = vunpack.c.h.b16 %v653
  %v1025 = vunpack.c.l.b16 %v654
  %v1026 = vunpack.c.h.b16 %v654
  %v1027 = vunpack.c.l.b16 %v655
  %v1028 = vunpack.c.h.b16 %v655
  %v1029 = vunpack.c.l.b16 %v656
  %v1030 = vunpack.c.h.b16 %v656
  %v1031 = vunpack.c.l.b16 %v657
  %v1032 = vunpack.c.h.b16 %v657
  %v1033 = vunpack.c.l.b16 %v658
  %v1034 = vunpack.c.h.b16 %v658
  %v1035 = vunpack.c.l.b16 %v659
  %v1036 = vunpack.c.h.b16 %v659
  %v1037 = vunpack.c.l.b16 %v660
  %v1038 = vunpack.c.h.b16 %v660
  %v1039 = vunpack.c.l.b16 %v661
  %v1040 = vunpack.c.h.b16 %v661
  %v1041 = vunpack.c.l.b16 %v662
  %v1042 = vunpack.c.h.b16 %v662
  %v1043 = vunpack.c.l.b16 %v663
  %v1044 = vunpack.c.h.b16 %v663
  %v1045 = vunpack.c.l.b16 %v664
  %v1046 = vunpack.c.h.b16 %v664
  %v1047 = vunpack.c.l.b16 %v665
  %v1048 = vunpack.c.h.b16 %v665
  %v1049 = vunpack.c.l.b16 %v666
  %v1050 = vunpack.c.h.b16 %v666
  %v1051 = vunpack.c.l.b16 %v667
  %v1052 = vunpack.c.h.b16 %v667
  %v1053 = vpack.c.b16 %v801, %v797
  %v1054 = vpack.c.b16 %v802, %v798
  %v1055 = vpack.c.b16 %v803, %v799
  %v1056 = vpack.c.b16 %v804, %v800
  %v1057 = vpack.c.b16 %v809, %v805
  %v1058 = vpack.c.b16 %v810, %v806
  %v1059 = vpack.c.b16 %v811, %v807
  %v1060 = vpack.c.b16 %v812, %v808
  %v1061 = vpack.c.b16 %v817, %v813
  %v1062 = vpack.c.b16 %v818, %v814
  %v1063 = vpack.c.b16 %v819, %v815
  %v1064 = vpack.c.b16 %v820, %v816
  %v1065 = vpack.c.b16 %v825, %v821
  %v1066 = vpack.c.b16 %v826, %v822
  %v1067 = vpack.c.b16 %v827, %v823
  %v1068 = vpack.c.b16 %v828, %v824
  %v1069 = vpack.c.b16 %v833, %v829
  %v1070 = vpack.c.b16 %v834, %v830
  %v1071 = vpack.c.b16 %v835, %v831
  %v1072 = vpack.c.b16 %v836, %v832
  %v1073 = vpack.c.b16 %v841, %v837
  %v1074 = vpack.c.b16 %v842, %v838
  %v1075 = vpack.c.b16 %v843, %v839
  %v1076 = vpack.c.b16 %v844, %v840
  %v1077 = vpack.c.b16 %v849, %v845
  %v1078 = vpack.c.b16 %v850, %v846
  %v1079 = vpack.c.b16 %v851, %v847
  %v1080 = vpack.c.b16 %v852, %v848
  %v1081 = vpack.c.b16 %v857, %v853
  %v1082 = vpack.c.b16 %v858, %v854
  %v1083 = vpack.c.b16 %v859, %v855
  %v1084 = vpack.c.b16 %v860, %v856
  %v1085 = vpack.c.b16 %v865, %v861
  %v1086 = vpack.c.b16 %v866, %v862
  %v1087 = vpack.c.b16 %v867, %v863
  %v1088 = vpack.c.b16 %v868, %v864
  %v1089 = vpack.c.b16 %v873, %v869
  %v1090 = vpack.c.b16 %v874, %v870
  %v1091 = vpack.c.b16 %v875, %v871
  %v1092 = vpack.c.b16 %v876, %v872
  %v1093 = vpack.c.b16 %v881, %v877
  %v1094 = vpack.c.b16 %v882, %v878
  %v1095 = vpack.c.b16 %v883, %v879
  %v1096 = vpack.c.b16 %v884, %v880
  %v1097 = vpack.c.b16 %v889, %v885
  %v1098 = vpack.c.b16 %v890, %v886
  %v1099 = vpack.c.b16 %v891, %v887
  %v1100 = vpack.c.b16 %v892, %v888
  %v1101 = vpack.c.b16 %v897, %v893
  %v1102 = vpack.c.b16 %v898, %v894
  %v1103 = vpack.c.b16 %v899, %v895
  %v1104 = vpack.c.b16 %v900, %v896
  %v1105 = vpack.c.b16 %v905, %v901
  %v1106 = vpack.c.b16 %v906, %v902
  %v1107 = vpack.c.b16 %v907, %v903
  %v1108 = vpack.c.b16 %v908, %v904
  %v1109 = vpack.c.b16 %v913, %v909
  %v1110 = vpack.c.b16 %v914, %v910
  %v1111 = vpack.c.b16 %v915, %v911
  %v1112 = vpack.c.b16 %v916, %v912
  %v1113 = vpack.c.b16 %v921, %v917
  %v1114 = vpack.c.b16 %v922, %v918
  %v1115 = vpack.c.b16 %v923, %v919
  %v1116 = vpack.c.b16 %v924, %v920
  %v1117 = vpack.c.b16 %v929, %v925
  %v1118 = vpack.c.b16 %v930, %v926
  %v1119 = vpack.c.b16 %v931, %v927
  %v1120 = vpack.c.b16 %v932, %v928
  %v1121 = vpack.c.b16 %v937, %v933
  %v1122 = vpack.c.b16 %v938, %v934
  %v1123 = vpack.c.b16 %v939, %v935
  %v1124 = vpack.c.b16 %v940, %v936
  %v1125 = vpack.c.b16 %v945, %v941
  %v1126 = vpack.c.b16 %v946, %v942
  %v1127 = vpack.c.b16 %v947, %v943
  %v1128 = vpack.c.b16 %v948, %v944
  %v1129 = vpack.c.b16 %v953, %v949
  %v1130 = vpack.c.b16 %v954, %v950
  %v1131 = vpack.c.b16 %v955, %v951
  %v1132 = vpack.c.b16 %v956, %v952
  %v1133 = vpack.c.b16 %v961, %v957
  %v1134 = vpack.c.b16 %v962, %v958
  %v1135 = vpack.c.b16 %v963, %v959
  %v1136 = vpack.c.b16 %v964, %v960
  %v1137 = vpack.c.b16 %v969, %v965
  %v1138 = vpack.c.b16 %v970, %v966
  %v1139 = vpack.c.b16 %v971, %v967
  %v1140 = vpack.c.b16 %v972, %v968
  %v1141 = vpack.c.b16 %v977, %v973
  %v1142 = vpack.c.b16 %v978, %v974
  %v1143 = vpack.c.b16 %v979, %v975
  %v1144 = vpack.c.b16 %v980, %v976
  %v1145 = vpack.c.b16 %v985, %v981
  %v1146 = vpack.c.b16 %v986, %v982
  %v1147 = vpack.c.b16 %v987, %v983
  %v1148 = vpack.c.b16 %v988, %v984
  %v1149 = vpack.c.b16 %v993, %v989
  %v1150 = vpack.c.b16 %v994, %v990
  %v1151 = vpack.c.b16 %v995, %v991
  %v1152 = vpack.c.b16 %v996, %v992
  %v1153 = vpack.c.b16 %v1001, %v997
  %v1154 = vpack.c.b16 %v1002, %v998
  %v1155 = vpack.c.b16 %v1003, %v999
  %v1156 = vpack.c.b16 %v1004, %v1000
  %v1157 = vpack.c.b16 %v1009, %v1005
  %v1158 = vpack.c.b16 %v1010, %v1006
  %v1159 = vpack.c.b16 %v1011, %v1007
  %v1160 = vpack.c.b16 %v1012, %v1008
  %v1161 = vpack.c.b16 %v1017, %v1013
  %v1162 = vpack.c.b16 %v1018, %v1014
  %v1163 = vpack.c.b16 %v1019, %v1015
  %v1164 = vpack.c.b16 %v1020, %v1016
  %v1165 = vpack.c.b16 %v1025, %v1021
  %v1166 = vpack.c.b16 %v1026, %v1022
  %v1167 = vpack.c.b16 %v1027, %v1023
  %v1168 = vpack.c.b16 %v1028, %v1024
  %v1169 = vpack.c.b16 %v1033, %v1029
  %v1170 = vpack.c.b16 %v1034, %v1030
  %v1171 = vpack.c.b16 %v1035, %v1031
  %v1172 = vpack.c.b16 %v1036, %v1032
  %v1173 = vpack.c.b16 %v1041, %v1037
  %v1174 = vpack.c.b16 %v1042, %v1038
  %v1175 = vpack.c.b16 %v1043, %v1039
  %v1176 = vpack.c.b16 %v1044, %v1040
  %v1177 = vpack.c.b16 %v1049, %v1045
  %v1178 = vpack.c.b16 %v1050, %v1046
  %v1179 = vpack.c.b16 %v1051, %v1047
  %v1180 = vpack.c.b16 %v1052, %v1048
  %v1310 = vperm.slane %v668, 0
  %v1311 = vperm.slane %v668, 1
  %v1312 = vperm.slane %v668, 2
  %v1313 = vperm.slane %v668, 3
  %1318 = vmatpush.bf16.msra.mxu0 %v1081
  %1319 = vmatpush.bf16.msra.mxu0 %v1077
  %1320 = vmatpush.bf16.msra.mxu0 %v1073
  %1321 = vmatpush.bf16.msra.mxu0 %v1069
  %1322 = vmatpush.bf16.msra.mxu0 %v1065
  %1323 = vmatpush.bf16.msra.mxu0 %v1061
  %1324 = vmatpush.bf16.msra.mxu0 %v1057
  %1325 = vmatpush.bf16.msra.mxu0 %v1053
  %1326 = vmatmul.bf16.gmra.mxu0 %v536
  %v1327 = vpop.f32.mrf.mxu0
  %v1328 = vadd.f32 %v1310, %v1327
  %v1329 = vpop.f32.mrf.mxu0
  %1330 = vdwg.mxu0
  %1331 = vmatpush.bf16.msra.mxu0 %v1113
  %1332 = vmatpush.bf16.msra.mxu0 %v1109
  %1333 = vmatpush.bf16.msra.mxu0 %v1105
  %1334 = vmatpush.bf16.msra.mxu0 %v1101
  %1335 = vmatpush.bf16.msra.mxu0 %v1097
  %1336 = vmatpush.bf16.msra.mxu0 %v1093
  %1337 = vmatpush.bf16.msra.mxu0 %v1089
  %1338 = vmatpush.bf16.msra.mxu0 %v1085
  %1339 = vmatmul.bf16.gmra.mxu0 %v537
  %v1340 = vpop.f32.mrf.mxu0
  %v1341 = vadd.f32 %v1328, %v1340
  %v1342 = vpop.f32.mrf.mxu0
  %1343 = vdwg.mxu0
  %1344 = vmatpush.bf16.msra.mxu0 %v1145
  %1345 = vmatpush.bf16.msra.mxu0 %v1141
  %1346 = vmatpush.bf16.msra.mxu0 %v1137
  %1347 = vmatpush.bf16.msra.mxu0 %v1133
  %1348 = vmatpush.bf16.msra.mxu0 %v1129
  %1349 = vmatpush.bf16.msra.mxu0 %v1125
  %1350 = vmatpush.bf16.msra.mxu0 %v1121
  %1351 = vmatpush.bf16.msra.mxu0 %v1117
  %1352 = vmatmul.bf16.gmra.mxu0 %v538
  %v1353 = vpop.f32.mrf.mxu0
  %v1354 = vadd.f32 %v1341, %v1353
  %v1355 = vpop.f32.mrf.mxu0
  %1356 = vdwg.mxu0
  %1357 = vmatpush.bf16.msra.mxu0 %v1177
  %1358 = vmatpush.bf16.msra.mxu0 %v1173
  %1359 = vmatpush.bf16.msra.mxu0 %v1169
  %1360 = vmatpush.bf16.msra.mxu0 %v1165
  %1361 = vmatpush.bf16.msra.mxu0 %v1161
  %1362 = vmatpush.bf16.msra.mxu0 %v1157
  %1363 = vmatpush.bf16.msra.mxu0 %v1153
  %1364 = vmatpush.bf16.msra.mxu0 %v1149
  %1365 = vmatmul.bf16.gmra.mxu0 %v539
  %v1366 = vpop.f32.mrf.mxu0
  %v1367 = vadd.f32 %v1354, %v1366
  %v1368 = vpop.f32.mrf.mxu0
  %1369 = vdwg.mxu0
  %1370 = vmatpush.bf16.msra.mxu0 %v1082
  %1371 = vmatpush.bf16.msra.mxu0 %v1078
  %1372 = vmatpush.bf16.msra.mxu0 %v1074
  %1373 = vmatpush.bf16.msra.mxu0 %v1070
  %1374 = vmatpush.bf16.msra.mxu0 %v1066
  %1375 = vmatpush.bf16.msra.mxu0 %v1062
  %1376 = vmatpush.bf16.msra.mxu0 %v1058
  %1377 = vmatpush.bf16.msra.mxu0 %v1054
  %1378 = vmatmul.bf16.gmra.mxu0 %v536
  %v1379 = vpop.f32.mrf.mxu0
  %v1380 = vadd.f32 %v1311, %v1379
  %v1381 = vpop.f32.mrf.mxu0
  %1382 = vdwg.mxu0
  %1383 = vmatpush.bf16.msra.mxu0 %v1114
  %1384 = vmatpush.bf16.msra.mxu0 %v1110
  %1385 = vmatpush.bf16.msra.mxu0 %v1106
  %1386 = vmatpush.bf16.msra.mxu0 %v1102
  %1387 = vmatpush.bf16.msra.mxu0 %v1098
  %1388 = vmatpush.bf16.msra.mxu0 %v1094
  %1389 = vmatpush.bf16.msra.mxu0 %v1090
  %1390 = vmatpush.bf16.msra.mxu0 %v1086
  %1391 = vmatmul.bf16.gmra.mxu0 %v537
  %v1392 = vpop.f32.mrf.mxu0
  %v1393 = vadd.f32 %v1380, %v1392
  %v1394 = vpop.f32.mrf.mxu0
  %1395 = vdwg.mxu0
  %1396 = vmatpush.bf16.msra.mxu0 %v1146
  %1397 = vmatpush.bf16.msra.mxu0 %v1142
  %1398 = vmatpush.bf16.msra.mxu0 %v1138
  %1399 = vmatpush.bf16.msra.mxu0 %v1134
  %1400 = vmatpush.bf16.msra.mxu0 %v1130
  %1401 = vmatpush.bf16.msra.mxu0 %v1126
  %1402 = vmatpush.bf16.msra.mxu0 %v1122
  %1403 = vmatpush.bf16.msra.mxu0 %v1118
  %1404 = vmatmul.bf16.gmra.mxu0 %v538
  %v1405 = vpop.f32.mrf.mxu0
  %v1406 = vadd.f32 %v1393, %v1405
  %v1407 = vpop.f32.mrf.mxu0
  %1408 = vdwg.mxu0
  %1409 = vmatpush.bf16.msra.mxu0 %v1178
  %1410 = vmatpush.bf16.msra.mxu0 %v1174
  %1411 = vmatpush.bf16.msra.mxu0 %v1170
  %1412 = vmatpush.bf16.msra.mxu0 %v1166
  %1413 = vmatpush.bf16.msra.mxu0 %v1162
  %1414 = vmatpush.bf16.msra.mxu0 %v1158
  %1415 = vmatpush.bf16.msra.mxu0 %v1154
  %1416 = vmatpush.bf16.msra.mxu0 %v1150
  %1417 = vmatmul.bf16.gmra.mxu0 %v539
  %v1418 = vpop.f32.mrf.mxu0
  %v1419 = vadd.f32 %v1406, %v1418
  %v1420 = vpop.f32.mrf.mxu0
  %1421 = vdwg.mxu0
  %1422 = vmatpush.bf16.msra.mxu0 %v1083
  %1423 = vmatpush.bf16.msra.mxu0 %v1079
  %1424 = vmatpush.bf16.msra.mxu0 %v1075
  %1425 = vmatpush.bf16.msra.mxu0 %v1071
  %1426 = vmatpush.bf16.msra.mxu0 %v1067
  %1427 = vmatpush.bf16.msra.mxu0 %v1063
  %1428 = vmatpush.bf16.msra.mxu0 %v1059
  %1429 = vmatpush.bf16.msra.mxu0 %v1055
  %1430 = vmatmul.bf16.gmra.mxu0 %v536
  %v1431 = vpop.f32.mrf.mxu0
  %v1432 = vadd.f32 %v1312, %v1431
  %v1433 = vpop.f32.mrf.mxu0
  %1434 = vdwg.mxu0
  %1435 = vmatpush.bf16.msra.mxu0 %v1115
  %1436 = vmatpush.bf16.msra.mxu0 %v1111
  %1437 = vmatpush.bf16.msra.mxu0 %v1107
  %1438 = vmatpush.bf16.msra.mxu0 %v1103
  %1439 = vmatpush.bf16.msra.mxu0 %v1099
  %1440 = vmatpush.bf16.msra.mxu0 %v1095
  %1441 = vmatpush.bf16.msra.mxu0 %v1091
  %1442 = vmatpush.bf16.msra.mxu0 %v1087
  %1443 = vmatmul.bf16.gmra.mxu0 %v537
  %v1444 = vpop.f32.mrf.mxu0
  %v1445 = vadd.f32 %v1432, %v1444
  %v1446 = vpop.f32.mrf.mxu0
  %1447 = vdwg.mxu0
  %1448 = vmatpush.bf16.msra.mxu0 %v1147
  %1449 = vmatpush.bf16.msra.mxu0 %v1143
  %1450 = vmatpush.bf16.msra.mxu0 %v1139
  %1451 = vmatpush.bf16.msra.mxu0 %v1135
  %1452 = vmatpush.bf16.msra.mxu0 %v1131
  %1453 = vmatpush.bf16.msra.mxu0 %v1127
  %1454 = vmatpush.bf16.msra.mxu0 %v1123
  %1455 = vmatpush.bf16.msra.mxu0 %v1119
  %1456 = vmatmul.bf16.gmra.mxu0 %v538
  %v1457 = vpop.f32.mrf.mxu0
  %v1458 = vadd.f32 %v1445, %v1457
  %v1459 = vpop.f32.mrf.mxu0
  %1460 = vdwg.mxu0
  %1461 = vmatpush.bf16.msra.mxu0 %v1179
  %1462 = vmatpush.bf16.msra.mxu0 %v1175
  %1463 = vmatpush.bf16.msra.mxu0 %v1171
  %1464 = vmatpush.bf16.msra.mxu0 %v1167
  %1465 = vmatpush.bf16.msra.mxu0 %v1163
  %1466 = vmatpush.bf16.msra.mxu0 %v1159
  %1467 = vmatpush.bf16.msra.mxu0 %v1155
  %1468 = vmatpush.bf16.msra.mxu0 %v1151
  %1469 = vmatmul.bf16.gmra.mxu0 %v539
  %v1470 = vpop.f32.mrf.mxu0
  %v1471 = vadd.f32 %v1458, %v1470
  %v1472 = vpop.f32.mrf.mxu0
  %1473 = vdwg.mxu0
  %1474 = vmatpush.bf16.msra.mxu0 %v1084
  %1475 = vmatpush.bf16.msra.mxu0 %v1080
  %1476 = vmatpush.bf16.msra.mxu0 %v1076
  %1477 = vmatpush.bf16.msra.mxu0 %v1072
  %1478 = vmatpush.bf16.msra.mxu0 %v1068
  %1479 = vmatpush.bf16.msra.mxu0 %v1064
  %1480 = vmatpush.bf16.msra.mxu0 %v1060
  %1481 = vmatpush.bf16.msra.mxu0 %v1056
  %1482 = vmatmul.bf16.gmra.mxu0 %v536
  %v1483 = vpop.f32.mrf.mxu0
  %v1484 = vadd.f32 %v1313, %v1483
  %v1485 = vpop.f32.mrf.mxu0
  %1486 = vdwg.mxu0
  %1487 = vmatpush.bf16.msra.mxu0 %v1116
  %1488 = vmatpush.bf16.msra.mxu0 %v1112
  %1489 = vmatpush.bf16.msra.mxu0 %v1108
  %1490 = vmatpush.bf16.msra.mxu0 %v1104
  %1491 = vmatpush.bf16.msra.mxu0 %v1100
  %1492 = vmatpush.bf16.msra.mxu0 %v1096
  %1493 = vmatpush.bf16.msra.mxu0 %v1092
  %1494 = vmatpush.bf16.msra.mxu0 %v1088
  %1495 = vmatmul.bf16.gmra.mxu0 %v537
  %v1496 = vpop.f32.mrf.mxu0
  %v1497 = vadd.f32 %v1484, %v1496
  %v1498 = vpop.f32.mrf.mxu0
  %1499 = vdwg.mxu0
  %1500 = vmatpush.bf16.msra.mxu0 %v1148
  %1501 = vmatpush.bf16.msra.mxu0 %v1144
  %1502 = vmatpush.bf16.msra.mxu0 %v1140
  %1503 = vmatpush.bf16.msra.mxu0 %v1136
  %1504 = vmatpush.bf16.msra.mxu0 %v1132
  %1505 = vmatpush.bf16.msra.mxu0 %v1128
  %1506 = vmatpush.bf16.msra.mxu0 %v1124
  %1507 = vmatpush.bf16.msra.mxu0 %v1120
  %1508 = vmatmul.bf16.gmra.mxu0 %v538
  %v1509 = vpop.f32.mrf.mxu0
  %v1510 = vadd.f32 %v1497, %v1509
  %v1511 = vpop.f32.mrf.mxu0
  %1512 = vdwg.mxu0
  %1513 = vmatpush.bf16.msra.mxu0 %v1180
  %1514 = vmatpush.bf16.msra.mxu0 %v1176
  %1515 = vmatpush.bf16.msra.mxu0 %v1172
  %1516 = vmatpush.bf16.msra.mxu0 %v1168
  %1517 = vmatpush.bf16.msra.mxu0 %v1164
  %1518 = vmatpush.bf16.msra.mxu0 %v1160
  %1519 = vmatpush.bf16.msra.mxu0 %v1156
  %1520 = vmatpush.bf16.msra.mxu0 %v1152
  %1521 = vmatmul.bf16.gmra.mxu0 %v539
  %v1522 = vpop.f32.mrf.mxu0
  %v1523 = vadd.f32 %v1510, %v1522
  %v1524 = vpop.f32.mrf.mxu0
  %1525 = vdwg.mxu0
  %v1526 = vmax.f32 %v1367, 0.0
  %v1527 = vmax.f32 %v1419, 0.0
  %v1528 = vmax.f32 %v1471, 0.0
  %v1529 = vmax.f32 %v1523, 0.0
  %v1530 = vpack.c.bf16 %v1526, %v1526
  %v1531 = vpack.c.bf16 %v1527, %v1527
  %v1532 = vpack.c.bf16 %v1528, %v1528
  %v1533 = vpack.c.bf16 %v1529, %v1529
  %v1534 = vld [vmem:[%s5] sm:$0xf]
  %v1535 = vld [vmem:[%s5 + $0x4] sm:$0xf]
  %v1536 = vld [vmem:[%s5 + $0x8] sm:$0xf]
  %v1537 = vld [vmem:[%s5 + $0xc] sm:$0xf]
  %v1538 = vld [vmem:[%s5 + $0x10] sm:$0xf]
  %v1539 = vld [vmem:[%s5 + $0x14] sm:$0xf]
  %v1540 = vld [vmem:[%s5 + $0x18] sm:$0xf]
  %v1541 = vld [vmem:[%s5 + $0x1c] sm:$0xf]
  %v1542 = vld [vmem:[%s5 + $0x20] sm:$0xf]
  %v1543 = vld [vmem:[%s5 + $0x24] sm:$0xf]
  %v1544 = vld [vmem:[%s5 + $0x28] sm:$0xf]
  %v1545 = vld [vmem:[%s5 + $0x2c] sm:$0xf]
  %v1546 = vld [vmem:[%s5 + $0x30] sm:$0xf]
  %v1547 = vld [vmem:[%s5 + $0x34] sm:$0xf]
  %v1548 = vld [vmem:[%s5 + $0x38] sm:$0xf]
  %v1549 = vld [vmem:[%s5 + $0x3c] sm:$0xf]
  %v1550 = vld [vmem:[%s5 + $0x40] sm:$0xf]
  %v1551 = vld [vmem:[%s5 + $0x44] sm:$0xf]
  %v1552 = vld [vmem:[%s5 + $0x48] sm:$0xf]
  %v1553 = vld [vmem:[%s5 + $0x4c] sm:$0xf]
  %v1554 = vld [vmem:[%s5 + $0x50] sm:$0xf]
  %v1555 = vld [vmem:[%s5 + $0x54] sm:$0xf]
  %v1556 = vld [vmem:[%s5 + $0x58] sm:$0xf]
  %v1557 = vld [vmem:[%s5 + $0x5c] sm:$0xf]
  %v1558 = vld [vmem:[%s5 + $0x60] sm:$0xf]
  %v1559 = vld [vmem:[%s5 + $0x64] sm:$0xf]
  %v1560 = vld [vmem:[%s5 + $0x68] sm:$0xf]
  %v1561 = vld [vmem:[%s5 + $0x6c] sm:$0xf]
  %v1562 = vld [vmem:[%s5 + $0x70] sm:$0xf]
  %v1563 = vld [vmem:[%s5 + $0x74] sm:$0xf]
  %v1564 = vld [vmem:[%s5 + $0x78] sm:$0xf]
  %v1565 = vld [vmem:[%s5 + $0x7c] sm:$0xf]
  %v1566 = vld [vmem:[%s5 + $0x80] sm:$0xf]
  %v1567 = vld [vmem:[%s5 + $0x84] sm:$0xf]
  %v1568 = vld [vmem:[%s5 + $0x88] sm:$0xf]
  %v1569 = vld [vmem:[%s5 + $0x8c] sm:$0xf]
  %v1570 = vld [vmem:[%s5 + $0x90] sm:$0xf]
  %v1571 = vld [vmem:[%s5 + $0x94] sm:$0xf]
  %v1572 = vld [vmem:[%s5 + $0x98] sm:$0xf]
  %v1573 = vld [vmem:[%s5 + $0x9c] sm:$0xf]
  %v1574 = vld [vmem:[%s5 + $0xa0] sm:$0xf]
  %v1575 = vld [vmem:[%s5 + $0xa4] sm:$0xf]
  %v1576 = vld [vmem:[%s5 + $0xa8] sm:$0xf]
  %v1577 = vld [vmem:[%s5 + $0xac] sm:$0xf]
  %v1578 = vld [vmem:[%s5 + $0xb0] sm:$0xf]
  %v1579 = vld [vmem:[%s5 + $0xb4] sm:$0xf]
  %v1580 = vld [vmem:[%s5 + $0xb8] sm:$0xf]
  %v1581 = vld [vmem:[%s5 + $0xbc] sm:$0xf]
  %v1582 = vld [vmem:[%s5 + $0xc0] sm:$0xf]
  %v1583 = vld [vmem:[%s5 + $0xc4] sm:$0xf]
  %v1584 = vld [vmem:[%s5 + $0xc8] sm:$0xf]
  %v1585 = vld [vmem:[%s5 + $0xcc] sm:$0xf]
  %v1586 = vld [vmem:[%s5 + $0xd0] sm:$0xf]
  %v1587 = vld [vmem:[%s5 + $0xd4] sm:$0xf]
  %v1588 = vld [vmem:[%s5 + $0xd8] sm:$0xf]
  %v1589 = vld [vmem:[%s5 + $0xdc] sm:$0xf]
  %v1590 = vld [vmem:[%s5 + $0xe0] sm:$0xf]
  %v1591 = vld [vmem:[%s5 + $0xe4] sm:$0xf]
  %v1592 = vld [vmem:[%s5 + $0xe8] sm:$0xf]
  %v1593 = vld [vmem:[%s5 + $0xec] sm:$0xf]
  %v1594 = vld [vmem:[%s5 + $0xf0] sm:$0xf]
  %v1595 = vld [vmem:[%s5 + $0xf4] sm:$0xf]
  %v1596 = vld [vmem:[%s5 + $0xf8] sm:$0xf]
  %v1597 = vld [vmem:[%s5 + $0xfc] sm:$0xf]
  %v1598 = vld [vmem:[%s6] sm:$0x1]
  %v1663 = vunpack.c.l.b16 %v1534
  %v1664 = vunpack.c.l.b16 %v1535
  %v1665 = vunpack.c.l.b16 %v1536
  %v1666 = vunpack.c.l.b16 %v1537
  %v1667 = vunpack.c.l.b16 %v1538
  %v1668 = vunpack.c.l.b16 %v1539
  %v1669 = vunpack.c.l.b16 %v1540
  %v1670 = vunpack.c.l.b16 %v1541
  %v1671 = vunpack.c.l.b16 %v1542
  %v1672 = vunpack.c.l.b16 %v1543
  %v1673 = vunpack.c.l.b16 %v1544
  %v1674 = vunpack.c.l.b16 %v1545
  %v1675 = vunpack.c.l.b16 %v1546
  %v1676 = vunpack.c.l.b16 %v1547
  %v1677 = vunpack.c.l.b16 %v1548
  %v1678 = vunpack.c.l.b16 %v1549
  %v1679 = vunpack.c.l.b16 %v1550
  %v1680 = vunpack.c.l.b16 %v1551
  %v1681 = vunpack.c.l.b16 %v1552
  %v1682 = vunpack.c.l.b16 %v1553
  %v1683 = vunpack.c.l.b16 %v1554
  %v1684 = vunpack.c.l.b16 %v1555
  %v1685 = vunpack.c.l.b16 %v1556
  %v1686 = vunpack.c.l.b16 %v1557
  %v1687 = vunpack.c.l.b16 %v1558
  %v1688 = vunpack.c.l.b16 %v1559
  %v1689 = vunpack.c.l.b16 %v1560
  %v1690 = vunpack.c.l.b16 %v1561
  %v1691 = vunpack.c.l.b16 %v1562
  %v1692 = vunpack.c.l.b16 %v1563
  %v1693 = vunpack.c.l.b16 %v1564
  %v1694 = vunpack.c.l.b16 %v1565
  %v1695 = vunpack.c.l.b16 %v1566
  %v1696 = vunpack.c.l.b16 %v1567
  %v1697 = vunpack.c.l.b16 %v1568
  %v1698 = vunpack.c.l.b16 %v1569
  %v1699 = vunpack.c.l.b16 %v1570
  %v1700 = vunpack.c.l.b16 %v1571
  %v1701 = vunpack.c.l.b16 %v1572
  %v1702 = vunpack.c.l.b16 %v1573
  %v1703 = vunpack.c.l.b16 %v1574
  %v1704 = vunpack.c.l.b16 %v1575
  %v1705 = vunpack.c.l.b16 %v1576
  %v1706 = vunpack.c.l.b16 %v1577
  %v1707 = vunpack.c.l.b16 %v1578
  %v1708 = vunpack.c.l.b16 %v1579
  %v1709 = vunpack.c.l.b16 %v1580
  %v1710 = vunpack.c.l.b16 %v1581
  %v1711 = vunpack.c.l.b16 %v1582
  %v1712 = vunpack.c.l.b16 %v1583
  %v1713 = vunpack.c.l.b16 %v1584
  %v1714 = vunpack.c.l.b16 %v1585
  %v1715 = vunpack.c.l.b16 %v1586
  %v1716 = vunpack.c.l.b16 %v1587
  %v1717 = vunpack.c.l.b16 %v1588
  %v1718 = vunpack.c.l.b16 %v1589
  %v1719 = vunpack.c.l.b16 %v1590
  %v1720 = vunpack.c.l.b16 %v1591
  %v1721 = vunpack.c.l.b16 %v1592
  %v1722 = vunpack.c.l.b16 %v1593
  %v1723 = vunpack.c.l.b16 %v1594
  %v1724 = vunpack.c.l.b16 %v1595
  %v1725 = vunpack.c.l.b16 %v1596
  %v1726 = vunpack.c.l.b16 %v1597
  %v1727 = vpack.c.b16 %v1664, %v1663
  %v1728 = vpack.c.b16 %v1666, %v1665
  %v1729 = vpack.c.b16 %v1668, %v1667
  %v1730 = vpack.c.b16 %v1670, %v1669
  %v1731 = vpack.c.b16 %v1672, %v1671
  %v1732 = vpack.c.b16 %v1674, %v1673
  %v1733 = vpack.c.b16 %v1676, %v1675
  %v1734 = vpack.c.b16 %v1678, %v1677
  %v1735 = vpack.c.b16 %v1680, %v1679
  %v1736 = vpack.c.b16 %v1682, %v1681
  %v1737 = vpack.c.b16 %v1684, %v1683
  %v1738 = vpack.c.b16 %v1686, %v1685
  %v1739 = vpack.c.b16 %v1688, %v1687
  %v1740 = vpack.c.b16 %v1690, %v1689
  %v1741 = vpack.c.b16 %v1692, %v1691
  %v1742 = vpack.c.b16 %v1694, %v1693
  %v1743 = vpack.c.b16 %v1696, %v1695
  %v1744 = vpack.c.b16 %v1698, %v1697
  %v1745 = vpack.c.b16 %v1700, %v1699
  %v1746 = vpack.c.b16 %v1702, %v1701
  %v1747 = vpack.c.b16 %v1704, %v1703
  %v1748 = vpack.c.b16 %v1706, %v1705
  %v1749 = vpack.c.b16 %v1708, %v1707
  %v1750 = vpack.c.b16 %v1710, %v1709
  %v1751 = vpack.c.b16 %v1712, %v1711
  %v1752 = vpack.c.b16 %v1714, %v1713
  %v1753 = vpack.c.b16 %v1716, %v1715
  %v1754 = vpack.c.b16 %v1718, %v1717
  %v1755 = vpack.c.b16 %v1720, %v1719
  %v1756 = vpack.c.b16 %v1722, %v1721
  %v1757 = vpack.c.b16 %v1724, %v1723
  %v1758 = vpack.c.b16 %v1726, %v1725
  %1791 = vmatpush.bf16.msra.mxu0 %v1734
  %1792 = vmatpush.bf16.msra.mxu0 %v1733
  %1793 = vmatpush.bf16.msra.mxu0 %v1732
  %1794 = vmatpush.bf16.msra.mxu0 %v1731
  %1795 = vmatpush.bf16.msra.mxu0 %v1730
  %1796 = vmatpush.bf16.msra.mxu0 %v1729
  %1797 = vmatpush.bf16.msra.mxu0 %v1728
  %1798 = vmatpush.bf16.msra.mxu0 %v1727
  %1799 = vmatmul.bf16.gmra.mxu0 %v1530
  %v1800 = vpop.f32.mrf.mxu0
  %v1801 = vadd.f32 %v1598, %v1800
  %v1802 = vpop.f32.mrf.mxu0
  %1803 = vdwg.mxu0
  %1804 = vmatpush.bf16.msra.mxu0 %v1742
  %1805 = vmatpush.bf16.msra.mxu0 %v1741
  %1806 = vmatpush.bf16.msra.mxu0 %v1740
  %1807 = vmatpush.bf16.msra.mxu0 %v1739
  %1808 = vmatpush.bf16.msra.mxu0 %v1738
  %1809 = vmatpush.bf16.msra.mxu0 %v1737
  %1810 = vmatpush.bf16.msra.mxu0 %v1736
  %1811 = vmatpush.bf16.msra.mxu0 %v1735
  %1812 = vmatmul.bf16.gmra.mxu0 %v1531
  %v1813 = vpop.f32.mrf.mxu0
  %v1814 = vadd.f32 %v1801, %v1813
  %v1815 = vpop.f32.mrf.mxu0
  %1816 = vdwg.mxu0
  %1817 = vmatpush.bf16.msra.mxu0 %v1750
  %1818 = vmatpush.bf16.msra.mxu0 %v1749
  %1819 = vmatpush.bf16.msra.mxu0 %v1748
  %1820 = vmatpush.bf16.msra.mxu0 %v1747
  %1821 = vmatpush.bf16.msra.mxu0 %v1746
  %1822 = vmatpush.bf16.msra.mxu0 %v1745
  %1823 = vmatpush.bf16.msra.mxu0 %v1744
  %1824 = vmatpush.bf16.msra.mxu0 %v1743
  %1825 = vmatmul.bf16.gmra.mxu0 %v1532
  %v1826 = vpop.f32.mrf.mxu0
  %v1827 = vadd.f32 %v1814, %v1826
  %v1828 = vpop.f32.mrf.mxu0
  %1829 = vdwg.mxu0
  %1830 = vmatpush.bf16.msra.mxu0 %v1758
  %1831 = vmatpush.bf16.msra.mxu0 %v1757
  %1832 = vmatpush.bf16.msra.mxu0 %v1756
  %1833 = vmatpush.bf16.msra.mxu0 %v1755
  %1834 = vmatpush.bf16.msra.mxu0 %v1754
  %1835 = vmatpush.bf16.msra.mxu0 %v1753
  %1836 = vmatpush.bf16.msra.mxu0 %v1752
  %1837 = vmatpush.bf16.msra.mxu0 %v1751
  %1838 = vmatmul.bf16.gmra.mxu0 %v1533
  %v1839 = vpop.f32.mrf.mxu0
  %v1840 = vadd.f32 %v1827, %v1839
  %v1841 = vpop.f32.mrf.mxu0
  %1842 = vdwg.mxu0
  %v1843 = vxor.u32 %v1840, 2147483648
  %v1844 = vmul.f32 %v1843, 1.442695
  %v1845 = vpow.pop %v1844
  %v1846 = vadd.f32 %v1845, 1.0
  %v1847 = vrcp.pop %v1846
  %v1848 = vmul.f32 %v1846, %v1847
  %v1849 = vsub.f32 1.0, %v1848
  %v1850 = vmul.f32 %v1847, %v1849
  %v1851 = vadd.f32 %v1847, %v1850
  %vm1852 = vweird.f32 %v1846
  %vm1853 = vweird.f32 %v1847
  %vm1854 = vmor %vm1852, %vm1853
  %v1855 = vsel %vm1854, %v1847, %v1851
  %v1856 = vand.u32 2147483647, %v1846
  %vm1857 = vcmp.eq.f32.partialorder %v1856, 8.507059e+37
  %v1858 = vand.u32 %v1846, 2147483648
  %v1859 = vor.u32 1.1754944e-38, %v1858
  %v1860 = vsel %vm1857, %v1859, %v1855
  %v1861 = vmul.f32 1.0, %v1860
  %1862 = vst [vmem:[%s7] sm:$0x1] %v1861
  // Predicated region
  $region30: #{belief_forward.1} parent=0 // pred_check
    _
  $region31: #{belief_forward.1} parent=0 // pred_check_branch
    %1864 = sbr.rel (0) target = $region33
  $region32: #{belief_forward.1} parent=0 // pred_region
    _
  $region33: #{belief_forward.1} parent=0 // pred_fallthru
    _
  // Predicated region
  $region34: #{belief_forward.1} parent=0 // pred_check
    _
  $region35: #{belief_forward.1} parent=0 // pred_check_branch
    %1866 = sbr.rel (0) target = $region37
  $region36: #{belief_forward.1} parent=0 // pred_region
    _
  $region37: #{belief_forward.1} parent=0 // pred_fallthru
    _

</llo_original>
